<compile_context>
chip_gen: v7x
topology: tpu7x:2x2x1
jax: 0.10.0
libtpu: 0.0.40
codegen_flags: <defaults>
</compile_context>

<pallas_src>
import jax
import jax.numpy as jnp
from jax.experimental import pallas as pl
from jax.experimental.pallas import tpu as pltpu

BN_EPS = 1e-5
LANE = 128


def _repvggdw_kernel(xp_ref, w_ref, b_ref, o_ref):
    # xp_ref block: (1, H+2, W+2, TC)  spatially zero-padded input tile
    # w_ref  block: (9, TC)            per-channel effective 3x3 taps
    # b_ref  block: (1, TC)            per-channel effective bias
    # o_ref  block: (1, H,   W,   TC)
    H = o_ref.shape[1]
    W = o_ref.shape[2]
    xp = xp_ref[0]                                       # (H+2, W+2, TC) f32
    TC = xp.shape[-1]

    acc = jnp.zeros((H, W, TC), jnp.float32) + b_ref[0][None, None, :]
    for dy in range(3):                                  # static 9-tap unroll
        for dx in range(3):
            tap = xp[dy:dy + H, dx:dx + W, :]            # shifted window
            acc = acc + tap * w_ref[dy * 3 + dx][None, None, :]
    o_ref[0] = acc.astype(o_ref.dtype)


def fold_repvggdw_params(p, eps=BN_EPS):
    """Fold eval-mode BN of both branches + identity into one dw3x3 + bias."""
    s3 = p["bn3_gamma"] / jnp.sqrt(p["bn3_var"] + eps)
    b3 = p["bn3_beta"] - p["bn3_mean"] * s3
    s1 = p["bn1_gamma"] / jnp.sqrt(p["bn1_var"] + eps)
    b1 = p["bn1_beta"] - p["bn1_mean"] * s1
    w_eff = p["w3"] * s3[:, None, None]                  # (C, 3, 3)
    w_eff = w_eff.at[:, 1, 1].add(p["w1"] * s1 + 1.0)    # 1x1 branch + identity
    b_eff = b3 + b1                                      # (C,)
    return w_eff, b_eff


def repvggdw_pallas(x_nchw, w_eff, b_eff, *, lane_tile=LANE):
    B, C, H, W = x_nchw.shape
    Cp = ((C + lane_tile - 1) // lane_tile) * lane_tile
    Hp, Wp = H + 2, W + 2

    # Layout plumbing (wrapper side): channels-last, lane-dense, halo-padded.
    x_nhwc = jnp.transpose(x_nchw, (0, 2, 3, 1))
    x_pad = jnp.pad(x_nhwc, ((0, 0), (1, 1), (1, 1), (0, Cp - C)))

    w_k = jnp.pad(jnp.transpose(w_eff, (1, 2, 0)).reshape(9, C),
                  ((0, 0), (0, Cp - C)))                 # (9, Cp)
    b_k = jnp.pad(b_eff, (0, Cp - C)).reshape(1, Cp)     # (1, Cp)

    n_ctiles = Cp // lane_tile

    # Explicit VMEM budget: double-buffered in/out/weight blocks + margin.
    blk_bytes = (Hp * Wp + H * W + 10) * lane_tile * 4
    vmem_bytes = int(2 * blk_bytes + (4 << 20))

    out = pl.pallas_call(
        _repvggdw_kernel,
        out_shape=jax.ShapeDtypeStruct((B, H, W, Cp), x_nchw.dtype),
        grid_spec=pltpu.PrefetchScalarGridSpec(
            num_scalar_prefetch=0,
            grid=(B, n_ctiles),
            in_specs=[
                pl.BlockSpec((1, Hp, Wp, lane_tile), lambda b, c: (b, 0, 0, c)),
                pl.BlockSpec((9, lane_tile), lambda b, c: (0, c)),
                pl.BlockSpec((1, lane_tile), lambda b, c: (0, c)),
            ],
            out_specs=pl.BlockSpec((1, H, W, lane_tile),
                                   lambda b, c: (b, 0, 0, c)),
        ),
        compiler_params=pltpu.CompilerParams(
            dimension_semantics=("parallel", "parallel"),
            vmem_limit_bytes=vmem_bytes),
    )(x_pad, w_k, b_k)

    out = out[..., :C]                                   # crop channel padding
    return jnp.transpose(out, (0, 3, 1, 2))              # back to NCHW


def repvggdw_ref(x, p, eps=BN_EPS):
    """Pure-JAX unfused reference: bn(dw3x3(x)) + bn(dw1x1(x)) + x (eval BN)."""
    B, C, H, W = x.shape
    dn = ("NCHW", "OIHW", "NCHW")

    def bn(y, g, b, m, v):
        inv = (g / jnp.sqrt(v + eps))[None, :, None, None]
        return (y - m[None, :, None, None]) * inv + b[None, :, None, None]

    y3 = jax.lax.conv_general_dilated(
        x, p["w3"][:, None, :, :], window_strides=(1, 1),
        padding=((1, 1), (1, 1)), feature_group_count=C,
        dimension_numbers=dn)
    y3 = bn(y3, p["bn3_gamma"], p["bn3_beta"], p["bn3_mean"], p["bn3_var"])

    y1 = jax.lax.conv_general_dilated(
        x, p["w1"][:, None, None, None], window_strides=(1, 1),
        padding=((0, 0), (0, 0)), feature_group_count=C,
        dimension_numbers=dn)
    y1 = bn(y1, p["bn1_gamma"], p["bn1_beta"], p["bn1_mean"], p["bn1_var"])

    return y3 + y1 + x


def init_params(key, C):
    ks = jax.random.split(key, 10)
    # dw 3x3: PyTorch Conv2d(ed, ed, 3, groups=ed) -> weight (ed,1,3,3), fan_in=9
    w3 = jax.random.uniform(ks[0], (C, 3, 3), jnp.float32, -1.0 / 3, 1.0 / 3)
    # dw 1x1: fan_in=1
    w1 = jax.random.uniform(ks[1], (C,), jnp.float32, -1.0, 1.0)
    # BN params (eval mode with non-trivial running stats to exercise the fold)
    bn3_gamma = 1.0 + 0.1 * jax.random.normal(ks[2], (C,), jnp.float32)
    bn3_beta = 0.1 * jax.random.normal(ks[3], (C,), jnp.float32)
    bn3_mean = 0.1 * jax.random.normal(ks[4], (C,), jnp.float32)
    bn3_var = jax.random.uniform(ks[5], (C,), jnp.float32, 0.5, 1.5)
    bn1_gamma = 1.0 + 0.1 * jax.random.normal(ks[6], (C,), jnp.float32)
    bn1_beta = 0.1 * jax.random.normal(ks[7], (C,), jnp.float32)
    bn1_mean = 0.1 * jax.random.normal(ks[8], (C,), jnp.float32)
    bn1_var = jax.random.uniform(ks[9], (C,), jnp.float32, 0.5, 1.5)
    return dict(w3=w3, w1=w1,
                bn3_gamma=bn3_gamma, bn3_beta=bn3_beta,
                bn3_mean=bn3_mean, bn3_var=bn3_var,
                bn1_gamma=bn1_gamma, bn1_beta=bn1_beta,
                bn1_mean=bn1_mean, bn1_var=bn1_var)


if __name__ == "__main__":
    key = jax.random.PRNGKey(0)
    k_x, k_p = jax.random.split(key)

    B, C, H, W = 2, 96, 16, 16          # C padded to 128 lanes inside wrapper
    x = jax.random.normal(k_x, (B, C, H, W), jnp.float32)
    params = init_params(k_p, C)

    w_eff, b_eff = fold_repvggdw_params(params)
    y = repvggdw_pallas(x, w_eff, b_eff)
    y = jax.block_until_ready(y)

    y_ref = repvggdw_ref(x, params)
    assert y.shape == x.shape
    assert jnp.allclose(y, y_ref, atol=1e-4, rtol=1e-4), "mismatch vs reference"
    print("KERNEL_OK")
</pallas_src>

<mosaic_0001>
module attributes {stable_mosaic.version = 11 : i64} {
  func.func @_repvggdw_kernel(%arg0: i32, %arg1: i32, %arg2: memref<1x18x18x128xf32, #tpu.memory_space<vmem>>, %arg3: memref<9x128xf32, #tpu.memory_space<vmem>>, %arg4: memref<1x128xf32, #tpu.memory_space<vmem>>, %arg5: memref<1x16x16x128xf32, #tpu.memory_space<vmem>>) attributes {dimension_semantics = [#tpu.dimension_semantics<parallel>, #tpu.dimension_semantics<parallel>], iteration_bounds = array<i64: 2, 1>, scalar_prefetch = 0 : i64, scratch_operands = 0 : i64, tpu.core_type = #tpu.core_type<tc>, window_params = [{transform_indices = @transform_0, window_bounds = array<i64: 1, 18, 18, 128>}, {transform_indices = @transform_1, window_bounds = array<i64: 9, 128>}, {transform_indices = @transform_2, window_bounds = array<i64: 1, 128>}, {transform_indices = @transform_3, window_bounds = array<i64: 1, 16, 16, 128>}]} {
    %c0 = arith.constant 0 : index
    %c0_0 = arith.constant 0 : index
    %c0_1 = arith.constant 0 : index
    %c0_2 = arith.constant 0 : index
    %0 = vector.load %arg2[%c0, %c0_0, %c0_1, %c0_2] : memref<1x18x18x128xf32, #tpu.memory_space<vmem>>, vector<1x18x18x128xf32>
    %1 = vector.shape_cast %0 : vector<1x18x18x128xf32> to vector<18x18x128xf32>
    %cst = arith.constant 0.000000e+00 : f32
    %2 = vector.broadcast %cst : f32 to vector<16x16x128xf32>
    %c0_3 = arith.constant 0 : index
    %c0_4 = arith.constant 0 : index
    %3 = vector.load %arg4[%c0_3, %c0_4] : memref<1x128xf32, #tpu.memory_space<vmem>>, vector<1x128xf32>
    %4 = vector.shape_cast %3 : vector<1x128xf32> to vector<128xf32>
    %5 = vector.shape_cast %4 : vector<128xf32> to vector<1x1x128xf32>
    %6 = vector.broadcast %5 : vector<1x1x128xf32> to vector<16x16x128xf32>
    %7 = arith.addf %2, %6 : vector<16x16x128xf32>
    %8 = vector.extract_strided_slice %1 {offsets = [0, 0, 0], sizes = [16, 16, 128], strides = [1, 1, 1]} : vector<18x18x128xf32> to vector<16x16x128xf32>
    %c0_5 = arith.constant 0 : index
    %c0_6 = arith.constant 0 : index
    %9 = vector.load %arg3[%c0_5, %c0_6] : memref<9x128xf32, #tpu.memory_space<vmem>>, vector<1x128xf32>
    %10 = vector.shape_cast %9 : vector<1x128xf32> to vector<128xf32>
    %11 = vector.shape_cast %10 : vector<128xf32> to vector<1x1x128xf32>
    %12 = vector.broadcast %11 : vector<1x1x128xf32> to vector<16x16x128xf32>
    %13 = arith.mulf %8, %12 : vector<16x16x128xf32>
    %14 = arith.addf %7, %13 : vector<16x16x128xf32>
    %15 = vector.extract_strided_slice %1 {offsets = [0, 1, 0], sizes = [16, 16, 128], strides = [1, 1, 1]} : vector<18x18x128xf32> to vector<16x16x128xf32>
    %c1 = arith.constant 1 : index
    %c0_7 = arith.constant 0 : index
    %16 = vector.load %arg3[%c1, %c0_7] : memref<9x128xf32, #tpu.memory_space<vmem>>, vector<1x128xf32>
    %17 = vector.shape_cast %16 : vector<1x128xf32> to vector<128xf32>
    %18 = vector.shape_cast %17 : vector<128xf32> to vector<1x1x128xf32>
    %19 = vector.broadcast %18 : vector<1x1x128xf32> to vector<16x16x128xf32>
    %20 = arith.mulf %15, %19 : vector<16x16x128xf32>
    %21 = arith.addf %14, %20 : vector<16x16x128xf32>
    %22 = vector.extract_strided_slice %1 {offsets = [0, 2, 0], sizes = [16, 16, 128], strides = [1, 1, 1]} : vector<18x18x128xf32> to vector<16x16x128xf32>
    %c2 = arith.constant 2 : index
    %c0_8 = arith.constant 0 : index
    %23 = vector.load %arg3[%c2, %c0_8] : memref<9x128xf32, #tpu.memory_space<vmem>>, vector<1x128xf32>
    %24 = vector.shape_cast %23 : vector<1x128xf32> to vector<128xf32>
    %25 = vector.shape_cast %24 : vector<128xf32> to vector<1x1x128xf32>
    %26 = vector.broadcast %25 : vector<1x1x128xf32> to vector<16x16x128xf32>
    %27 = arith.mulf %22, %26 : vector<16x16x128xf32>
    %28 = arith.addf %21, %27 : vector<16x16x128xf32>
    %29 = vector.extract_strided_slice %1 {offsets = [1, 0, 0], sizes = [16, 16, 128], strides = [1, 1, 1]} : vector<18x18x128xf32> to vector<16x16x128xf32>
    %c3 = arith.constant 3 : index
    %c0_9 = arith.constant 0 : index
    %30 = vector.load %arg3[%c3, %c0_9] : memref<9x128xf32, #tpu.memory_space<vmem>>, vector<1x128xf32>
    %31 = vector.shape_cast %30 : vector<1x128xf32> to vector<128xf32>
    %32 = vector.shape_cast %31 : vector<128xf32> to vector<1x1x128xf32>
    %33 = vector.broadcast %32 : vector<1x1x128xf32> to vector<16x16x128xf32>
    %34 = arith.mulf %29, %33 : vector<16x16x128xf32>
    %35 = arith.addf %28, %34 : vector<16x16x128xf32>
    %36 = vector.extract_strided_slice %1 {offsets = [1, 1, 0], sizes = [16, 16, 128], strides = [1, 1, 1]} : vector<18x18x128xf32> to vector<16x16x128xf32>
    %c4 = arith.constant 4 : index
    %c0_10 = arith.constant 0 : index
    %37 = vector.load %arg3[%c4, %c0_10] : memref<9x128xf32, #tpu.memory_space<vmem>>, vector<1x128xf32>
    %38 = vector.shape_cast %37 : vector<1x128xf32> to vector<128xf32>
    %39 = vector.shape_cast %38 : vector<128xf32> to vector<1x1x128xf32>
    %40 = vector.broadcast %39 : vector<1x1x128xf32> to vector<16x16x128xf32>
    %41 = arith.mulf %36, %40 : vector<16x16x128xf32>
    %42 = arith.addf %35, %41 : vector<16x16x128xf32>
    %43 = vector.extract_strided_slice %1 {offsets = [1, 2, 0], sizes = [16, 16, 128], strides = [1, 1, 1]} : vector<18x18x128xf32> to vector<16x16x128xf32>
    %c5 = arith.constant 5 : index
    %c0_11 = arith.constant 0 : index
    %44 = vector.load %arg3[%c5, %c0_11] : memref<9x128xf32, #tpu.memory_space<vmem>>, vector<1x128xf32>
    %45 = vector.shape_cast %44 : vector<1x128xf32> to vector<128xf32>
    %46 = vector.shape_cast %45 : vector<128xf32> to vector<1x1x128xf32>
    %47 = vector.broadcast %46 : vector<1x1x128xf32> to vector<16x16x128xf32>
    %48 = arith.mulf %43, %47 : vector<16x16x128xf32>
    %49 = arith.addf %42, %48 : vector<16x16x128xf32>
    %50 = vector.extract_strided_slice %1 {offsets = [2, 0, 0], sizes = [16, 16, 128], strides = [1, 1, 1]} : vector<18x18x128xf32> to vector<16x16x128xf32>
    %c6 = arith.constant 6 : index
    %c0_12 = arith.constant 0 : index
    %51 = vector.load %arg3[%c6, %c0_12] : memref<9x128xf32, #tpu.memory_space<vmem>>, vector<1x128xf32>
    %52 = vector.shape_cast %51 : vector<1x128xf32> to vector<128xf32>
    %53 = vector.shape_cast %52 : vector<128xf32> to vector<1x1x128xf32>
    %54 = vector.broadcast %53 : vector<1x1x128xf32> to vector<16x16x128xf32>
    %55 = arith.mulf %50, %54 : vector<16x16x128xf32>
    %56 = arith.addf %49, %55 : vector<16x16x128xf32>
    %57 = vector.extract_strided_slice %1 {offsets = [2, 1, 0], sizes = [16, 16, 128], strides = [1, 1, 1]} : vector<18x18x128xf32> to vector<16x16x128xf32>
    %c7 = arith.constant 7 : index
    %c0_13 = arith.constant 0 : index
    %58 = vector.load %arg3[%c7, %c0_13] : memref<9x128xf32, #tpu.memory_space<vmem>>, vector<1x128xf32>
    %59 = vector.shape_cast %58 : vector<1x128xf32> to vector<128xf32>
    %60 = vector.shape_cast %59 : vector<128xf32> to vector<1x1x128xf32>
    %61 = vector.broadcast %60 : vector<1x1x128xf32> to vector<16x16x128xf32>
    %62 = arith.mulf %57, %61 : vector<16x16x128xf32>
    %63 = arith.addf %56, %62 : vector<16x16x128xf32>
    %64 = vector.extract_strided_slice %1 {offsets = [2, 2, 0], sizes = [16, 16, 128], strides = [1, 1, 1]} : vector<18x18x128xf32> to vector<16x16x128xf32>
    %c8 = arith.constant 8 : index
    %c0_14 = arith.constant 0 : index
    %65 = vector.load %arg3[%c8, %c0_14] : memref<9x128xf32, #tpu.memory_space<vmem>>, vector<1x128xf32>
    %66 = vector.shape_cast %65 : vector<1x128xf32> to vector<128xf32>
    %67 = vector.shape_cast %66 : vector<128xf32> to vector<1x1x128xf32>
    %68 = vector.broadcast %67 : vector<1x1x128xf32> to vector<16x16x128xf32>
    %69 = arith.mulf %64, %68 : vector<16x16x128xf32>
    %70 = arith.addf %63, %69 : vector<16x16x128xf32>
    %c0_15 = arith.constant 0 : index
    %c0_16 = arith.constant 0 : index
    %c0_17 = arith.constant 0 : index
    %c0_18 = arith.constant 0 : index
    %71 = vector.load %arg5[%c0_15, %c0_16, %c0_17, %c0_18] : memref<1x16x16x128xf32, #tpu.memory_space<vmem>>, vector<1x16x16x128xf32>
    %72 = vector.shape_cast %71 : vector<1x16x16x128xf32> to vector<16x16x128xf32>
    %73 = vector.shape_cast %70 : vector<16x16x128xf32> to vector<1x16x16x128xf32>
    tpu.vector_store %arg5[%c0_15, %c0_16, %c0_17, %c0_18], %73 {strides = array<i32>} : memref<1x16x16x128xf32, #tpu.memory_space<vmem>>, vector<1x16x16x128xf32>,
    return
  }
  func.func @transform_0(%arg0: i32, %arg1: i32) -> (i32, i32, i32, i32) {
    %c0_i32 = arith.constant 0 : i32
    %c0_i32_0 = arith.constant 0 : i32
    %c0_i32_1 = arith.constant 0 : i32
    return %arg0, %c0_i32, %c0_i32_0, %arg1 : i32, i32, i32, i32
  }
  func.func @transform_1(%arg0: i32, %arg1: i32) -> (i32, i32) {
    %c0_i32 = arith.constant 0 : i32
    %c0_i32_0 = arith.constant 0 : i32
    return %c0_i32, %arg1 : i32, i32
  }
  func.func @transform_2(%arg0: i32, %arg1: i32) -> (i32, i32) {
    %c0_i32 = arith.constant 0 : i32
    %c0_i32_0 = arith.constant 0 : i32
    return %c0_i32, %arg1 : i32, i32
  }
  func.func @transform_3(%arg0: i32, %arg1: i32) -> (i32, i32, i32, i32) {
    %c0_i32 = arith.constant 0 : i32
    %c0_i32_0 = arith.constant 0 : i32
    %c0_i32_1 = arith.constant 0 : i32
    return %arg0, %c0_i32, %c0_i32_0, %arg1 : i32, i32, i32, i32
  }
}

</mosaic_0001>

<llo_original>
// kernel: tpu_custom_call.1
$region0: #{tpu_custom_call.1}
  #allocation0 [shape = 'u32[]', space=smem, size = 0x4, offset = 0x4, fixed_abs, tag = 'smem constant byte address 0x4 - core index']
  #allocation1 [shape = 'u32[144,128]{1,0:T(1,128)}', space=vmem, size = 0x12000, scoped, tag = 'internal scratch']
  %s0 = inlined_call_operand.vmem [shape: f32[2,18,18,128], index: 0, kind: input, shape index: {}]
  %s1 = inlined_call_operand.vmem [shape: f32[9,128], index: 1, kind: input, shape index: {}]
  %s2 = inlined_call_operand.vmem [shape: f32[1,128], index: 2, kind: input, shape index: {}]
  %s3 = inlined_call_operand.hbm [shape: f32[2,16,16,128], index: 3, kind: output, shape index: {}]
  %s4 = sld [smem:[#allocation0]]
  $region45: #{tpu_custom_call.1} parent=0
    _
  %s6 = ssub.s32 1, %s4
  %s7 = scalar_select 0, %s6, %s4
  $region1: #{tpu_custom_call.1} parent=0
    #allocation2 [shape = 'u8[262144]{0}', space=vmem, size = 0x40000, scoped, tag = 'output window, operand 0']
    #allocation3 [shape = 's32[2]{0}', space=sflag, size = 0x8, scoped, tag = 'scoped memory for tpu_custom_call.1']
    %8 = vsyncpa [#allocation3], 0
    %s9 = scalar_lea.sflag [#allocation3], 1
    %10 = vsyncpa %s9, 0
    loop: start=0, step=1, limit=4
    $region2: #{tpu_custom_call.1} parent=1 // loop_pre_header
      _
    $region3: #{tpu_custom_call.1} parent=1 // loop_header
      %s12 = sphi 0, %s16
      %p13 = scmp.ge.s32.totalorder %s12, 4
      %s19 = sphi 0, %s31
      %s20 = sphi 0, %s27
      %s21 = sphi 0, %s19
      %s22 = sphi 0, %s20
      %s23 = sphi 0, %s21
      %s24 = sphi 0, %s22
      %s36 = sphi 0, %s38
      %s39 = sphi 0, %s36
      %s40 = sphi 0, %s39
      %s56 = sphi 0, %s40
      %s62 = sphi 0, %s64
      %s65 = sphi 0, %s62
      %s66 = sphi 0, %s65
      %s82 = sphi 0, %s66
      %s88 = sphi 0, %s90
      %s91 = sphi 0, %s88
      %s92 = sphi 0, %s91
      %s108 = sphi 0, %s92
      %s116 = sphi 0, %s118
      %s119 = sphi 0, %s116
      %s120 = sphi 0, %s119
      %s136 = sphi 0, %s120
    $region4: #{tpu_custom_call.1} parent=1 // loop_header_branch
      %15 = sbr.rel (%p13) target = $region8
    $region5: #{tpu_custom_call.1} parent=1 // loop_body
      %s17 = ssub.s32 %s12, 1
      %s18 = ssub.s32 %s12, 2
      %s25 = sadd.s32 1, %s20
      %p26 = scmp.ge.s32.totalorder %s25, 1
      %s27 = scalar_select %p26, 0, %s25
      %s28 = sadd.s32 1, %s19
      %s29 = scalar_select %p26, %s28, %s19
      %p30 = scmp.ge.s32.totalorder %s29, 2
      %s31 = scalar_select %p30, 0, %s29
      %s32 = ssub.s32 %s19, %s31
      %s33 = ssub.s32 %s20, %s27
      %s34 = sor.u32 %s32, %s33
      %p35 = scmp.eq.s32.totalorder %s34, 0
      %s37 = sadd.s32 %s36, 1
      %s38 = scalar_select %p35, %s36, %s37
      %p41 = pneg %p35
      %p42 = scmp.eq.s32.totalorder %s12, 1
      %p43 = por %p41, %p42
      %p44 = scmp.ne.s32.totalorder %s36, %s39
      %p45 = scmp.eq.s32.totalorder %s12, 0
      %p46 = por %p44, %p45
      %p47 = scmp.ne.s32.totalorder %s36, %s39
      %p48 = scmp.eq.s32.totalorder %s17, 1
      %p49 = por %p47, %p48
      %p50 = scmp.ne.s32.totalorder %s39, %s40
      %p51 = scmp.eq.s32.totalorder %s17, 0
      %p52 = por %p50, %p51
      %p53 = scmp.ne.s32.totalorder %s39, %s40
      %p54 = scmp.eq.s32.totalorder %s18, 1
      %p55 = por %p53, %p54
      %p57 = scmp.ne.s32.totalorder %s40, %s56
      %p58 = scmp.eq.s32.totalorder %s18, 0
      %p59 = por %p57, %p58
      %s60 = ssub.s32 %s20, %s27
      %p61 = scmp.eq.s32.totalorder %s60, 0
      %s63 = sadd.s32 %s62, 1
      %s64 = scalar_select %p61, %s62, %s63
      %p67 = pneg %p61
      %p68 = scmp.eq.s32.totalorder %s12, 1
      %p69 = por %p67, %p68
      %p70 = scmp.ne.s32.totalorder %s62, %s65
      %p71 = scmp.eq.s32.totalorder %s12, 0
      %p72 = por %p70, %p71
      %p73 = scmp.ne.s32.totalorder %s62, %s65
      %p74 = scmp.eq.s32.totalorder %s17, 1
      %p75 = por %p73, %p74
      %p76 = scmp.ne.s32.totalorder %s65, %s66
      %p77 = scmp.eq.s32.totalorder %s17, 0
      %p78 = por %p76, %p77
      %p79 = scmp.ne.s32.totalorder %s65, %s66
      %p80 = scmp.eq.s32.totalorder %s18, 1
      %p81 = por %p79, %p80
      %p83 = scmp.ne.s32.totalorder %s66, %s82
      %p84 = scmp.eq.s32.totalorder %s18, 0
      %p85 = por %p83, %p84
      %s86 = ssub.s32 %s20, %s27
      %p87 = scmp.eq.s32.totalorder %s86, 0
      %s89 = sadd.s32 %s88, 1
      %s90 = scalar_select %p87, %s88, %s89
      %p93 = pneg %p87
      %p94 = scmp.eq.s32.totalorder %s12, 1
      %p95 = por %p93, %p94
      %p96 = scmp.ne.s32.totalorder %s88, %s91
      %p97 = scmp.eq.s32.totalorder %s12, 0
      %p98 = por %p96, %p97
      %p99 = scmp.ne.s32.totalorder %s88, %s91
      %p100 = scmp.eq.s32.totalorder %s17, 1
      %p101 = por %p99, %p100
      %p102 = scmp.ne.s32.totalorder %s91, %s92
      %p103 = scmp.eq.s32.totalorder %s17, 0
      %p104 = por %p102, %p103
      %p105 = scmp.ne.s32.totalorder %s91, %s92
      %p106 = scmp.eq.s32.totalorder %s18, 1
      %p107 = por %p105, %p106
      %p109 = scmp.ne.s32.totalorder %s92, %s108
      %p110 = scmp.eq.s32.totalorder %s18, 0
      %p111 = por %p109, %p110
      %s112 = ssub.s32 %s19, %s31
      %s113 = ssub.s32 %s20, %s27
      %s114 = sor.u32 %s112, %s113
      %p115 = scmp.eq.s32.totalorder %s114, 0
      %s117 = sadd.s32 %s116, 1
      %s118 = scalar_select %p115, %s116, %s117
      %p121 = pneg %p115
      %p122 = scmp.eq.s32.totalorder %s12, 1
      %p123 = por %p121, %p122
      %p124 = scmp.ne.s32.totalorder %s116, %s119
      %p125 = scmp.eq.s32.totalorder %s12, 0
      %p126 = por %p124, %p125
      %p127 = scmp.ne.s32.totalorder %s116, %s119
      %p128 = scmp.eq.s32.totalorder %s17, 1
      %p129 = por %p127, %p128
      %p130 = scmp.ne.s32.totalorder %s119, %s120
      %p131 = scmp.eq.s32.totalorder %s17, 0
      %p132 = por %p130, %p131
      %p133 = scmp.ne.s32.totalorder %s119, %s120
      %p134 = scmp.eq.s32.totalorder %s18, 1
      %p135 = por %p133, %p134
      %p137 = scmp.ne.s32.totalorder %s120, %s136
      %p138 = scmp.eq.s32.totalorder %s18, 0
      %p139 = por %p137, %p138
      %p140 = scmp.le.s32.totalorder 1, %s12
      %p141 = scmp.lt.s32.totalorder %s12, 3
      %p142 = pnand %p140, %p141
      %p143 = pneg %p142
      // Predicated region
      $region9: #{tpu_custom_call.1} parent=5 // pred_check
        _
      $region10: #{tpu_custom_call.1} parent=5 // pred_check_branch
        %145 = sbr.rel (%p142) target = $region12
      $region11: #{tpu_custom_call.1} parent=5 // pred_region
        %s146 = ssub.s32 %s12, 1
        // Predicated region
        $region13: #{tpu_custom_call.1} parent=11 // pred_check
          %p147 = pneg %p78
        $region14: #{tpu_custom_call.1} parent=11 // pred_check_branch
          %149 = sbr.rel (%p147) target = $region16
        $region15: #{tpu_custom_call.1} parent=11 // pred_region
          %p150 = scmp.lt.s32.totalorder %s22, 0
          %s151 = scalar_select %p150, %s22, 0
          %s152 = smul.addr %s151, 8
          %s153 = scalar_lea.vmem %s1, %s152
        $region16: #{tpu_custom_call.1} parent=11 // pred_fallthru
          _
        // Predicated region
        $region17: #{tpu_custom_call.1} parent=11 // pred_check
          %p154 = pneg %p104
        $region18: #{tpu_custom_call.1} parent=11 // pred_check_branch
          %156 = sbr.rel (%p154) target = $region20
        $region19: #{tpu_custom_call.1} parent=11 // pred_region
          %p157 = scmp.lt.s32.totalorder %s22, 0
          %s158 = scalar_select %p157, %s22, 0
          %s159 = scalar_lea.vmem %s2, %s158
        $region20: #{tpu_custom_call.1} parent=11 // pred_fallthru
          _
      $region12: #{tpu_custom_call.1} parent=5 // pred_fallthru
        _
      %p160 = scmp.lt.s32.totalorder %s12, 2
      // Predicated region
      $region21: #{tpu_custom_call.1} parent=5 // pred_check
        %p161 = pneg %p160
      $region22: #{tpu_custom_call.1} parent=5 // pred_check_branch
        %163 = sbr.rel (%p161) target = $region24
      $region23: #{tpu_custom_call.1} parent=5 // pred_region
        // Predicated region
        $region25: #{tpu_custom_call.1} parent=23 // pred_check
          %p164 = pneg %p46
        $region26: #{tpu_custom_call.1} parent=23 // pred_check_branch
          %166 = sbr.rel (%p164) target = $region28
        $region27: #{tpu_custom_call.1} parent=23 // pred_region
          %p167 = scmp.lt.s32.totalorder %s19, 1
          %s168 = scalar_select %p167, %s19, 1
          %p169 = scmp.lt.s32.totalorder %s20, 0
          %s170 = scalar_select %p169, %s20, 0
          %s171 = smul.addr %s168, 54
          %s172 = sadd.s32 %s170, %s171
          %s173 = smul.addr %s172, 8
          %s174 = scalar_lea.vmem %s0, %s173
        $region28: #{tpu_custom_call.1} parent=23 // pred_fallthru
          _
      $region24: #{tpu_custom_call.1} parent=5 // pred_fallthru
        _
      %p175 = scmp.le.s32.totalorder 1, %s12
      %p176 = scmp.lt.s32.totalorder %s12, 3
      %p177 = pnand %p175, %p176
      %p178 = pneg %p177
      // Predicated region
      $region29: #{tpu_custom_call.1} parent=5 // pred_check
        _
      $region30: #{tpu_custom_call.1} parent=5 // pred_check_branch
        %180 = sbr.rel (%p177) target = $region32
      $region31: #{tpu_custom_call.1} parent=5 // pred_region
        %s181 = ssub.s32 %s12, 1
        %p182 = scmp.lt.s32.totalorder %s21, 1
        %s183 = scalar_select %p182, %s21, 1
        %p184 = scmp.lt.s32.totalorder %s22, 0
        %s185 = scalar_select %p184, %s22, 0
        %s186 = smul.addr %s183, 54
        %s187 = sadd.s32 %s185, %s186
        %s188 = smul.addr %s187, 8
        %s189 = scalar_lea.vmem %s0, %s188
        %p190 = pneg %p52
        %p191 = pneg %p49
        %p192 = scmp.lt.s32.totalorder %s22, 0
        %s193 = scalar_select %p192, %s22, 0
        %s194 = smul.addr %s193, 8
        %s195 = scalar_lea.vmem %s1, %s194
        %p196 = pneg %p78
        %p197 = pneg %p75
        %p198 = scmp.lt.s32.totalorder %s22, 0
        %s199 = scalar_select %p198, %s22, 0
        %s200 = scalar_lea.vmem %s2, %s199
        %p201 = pneg %p104
        %p202 = pneg %p101
        %p203 = pneg %p132
        %p204 = pneg %p129
        %s205 = sand.u32 %s119, 1
        %s206 = scalar_lea.sflag [#allocation3], %s205
        %s207 = sand.u32 %s119, 1
        %s208 = smul.addr %s207, 256
        %s209 = scalar_lea.vmem [#allocation2], %s208
        %p210 = scmp.lt.s32.totalorder %s21, 1
        %s211 = scalar_select %p210, %s21, 1
        %p212 = scmp.lt.s32.totalorder %s22, 0
        %s213 = scalar_select %p212, %s22, 0
        %s214 = smul.addr %s211, 54
        %s215 = sadd.s32 %s213, %s214
        %s216 = smul.addr %s215, 8
        %s217 = scalar_lea.vmem %s0, %s216
        %p218 = scmp.lt.s32.totalorder %s22, 0
        %s219 = scalar_select %p218, %s22, 0
        %s220 = smul.addr %s219, 8
        %s221 = scalar_lea.vmem %s1, %s220
        %p222 = scmp.lt.s32.totalorder %s22, 0
        %s223 = scalar_select %p222, %s22, 0
        %s224 = scalar_lea.vmem %s2, %s223
        %v225 = vld [vmem:[%s217] sm:$0xff]
        %v226 = vld [vmem:[%s217 + $0x8] sm:$0xff]
        %v227 = vld [vmem:[%s217 + $0x10] sm:$0x3]
        %v228 = vld [vmem:[%s217 + $0x18] sm:$0xff]
        %v229 = vld [vmem:[%s217 + $0x20] sm:$0xff]
        %v230 = vld [vmem:[%s217 + $0x28] sm:$0x3]
        %v231 = vld [vmem:[%s217 + $0x30] sm:$0xff]
        %v232 = vld [vmem:[%s217 + $0x38] sm:$0xff]
        %v233 = vld [vmem:[%s217 + $0x40] sm:$0x3]
        %v234 = vld [vmem:[%s217 + $0x48] sm:$0xff]
        %v235 = vld [vmem:[%s217 + $0x50] sm:$0xff]
        %v236 = vld [vmem:[%s217 + $0x58] sm:$0x3]
        %v237 = vld [vmem:[%s217 + $0x60] sm:$0xff]
        %v238 = vld [vmem:[%s217 + $0x68] sm:$0xff]
        %v239 = vld [vmem:[%s217 + $0x70] sm:$0x3]
        %v240 = vld [vmem:[%s217 + $0x78] sm:$0xff]
        %v241 = vld [vmem:[%s217 + $0x80] sm:$0xff]
        %v242 = vld [vmem:[%s217 + $0x88] sm:$0x3]
        %v243 = vld [vmem:[%s217 + $0x90] sm:$0xff]
        %v244 = vld [vmem:[%s217 + $0x98] sm:$0xff]
        %v245 = vld [vmem:[%s217 + $0xa0] sm:$0x3]
        %v246 = vld [vmem:[%s217 + $0xa8] sm:$0xff]
        %v247 = vld [vmem:[%s217 + $0xb0] sm:$0xff]
        %v248 = vld [vmem:[%s217 + $0xb8] sm:$0x3]
        %v249 = vld [vmem:[%s217 + $0xc0] sm:$0xff]
        %v250 = vld [vmem:[%s217 + $0xc8] sm:$0xff]
        %v251 = vld [vmem:[%s217 + $0xd0] sm:$0x3]
        %v252 = vld [vmem:[%s217 + $0xd8] sm:$0xff]
        %v253 = vld [vmem:[%s217 + $0xe0] sm:$0xff]
        %v254 = vld [vmem:[%s217 + $0xe8] sm:$0x3]
        %v255 = vld [vmem:[%s217 + $0xf0] sm:$0xff]
        %v256 = vld [vmem:[%s217 + $0xf8] sm:$0xff]
        %v257 = vld [vmem:[%s217 + $0x100] sm:$0x3]
        %v258 = vld [vmem:[%s217 + $0x108] sm:$0xff]
        %v259 = vld [vmem:[%s217 + $0x110] sm:$0xff]
        %v260 = vld [vmem:[%s217 + $0x118] sm:$0x3]
        %v261 = vld [vmem:[%s217 + $0x120] sm:$0xff]
        %v262 = vld [vmem:[%s217 + $0x128] sm:$0xff]
        %v263 = vld [vmem:[%s217 + $0x130] sm:$0x3]
        %v264 = vld [vmem:[%s217 + $0x138] sm:$0xff]
        %v265 = vld [vmem:[%s217 + $0x140] sm:$0xff]
        %v266 = vld [vmem:[%s217 + $0x148] sm:$0x3]
        %v267 = vld [vmem:[%s217 + $0x150] sm:$0xff]
        %v268 = vld [vmem:[%s217 + $0x158] sm:$0xff]
        %v269 = vld [vmem:[%s217 + $0x160] sm:$0x3]
        %v270 = vld [vmem:[%s217 + $0x168] sm:$0xff]
        %v271 = vld [vmem:[%s217 + $0x170] sm:$0xff]
        %v272 = vld [vmem:[%s217 + $0x178] sm:$0x3]
        %v273 = vld [vmem:[%s217 + $0x180] sm:$0xff]
        %v274 = vld [vmem:[%s217 + $0x188] sm:$0xff]
        %v275 = vld [vmem:[%s217 + $0x190] sm:$0x3]
        %v276 = vld [vmem:[%s217 + $0x198] sm:$0xff]
        %v277 = vld [vmem:[%s217 + $0x1a0] sm:$0xff]
        %v278 = vld [vmem:[%s217 + $0x1a8] sm:$0x3]
        %v279 = vld [vmem:[%s224] sm:$0x1]
        %v281 = vlaneseq
        %v282 = vshrl.u32 %v281, 7
        %v283 = vsub.s32 0, %v282
        %v284 = vrot.slane %v279, %v283
        %v286 = vadd.f32 %v284, 0.0
        %v287 = vld [vmem:[%s221] sm:$0x1]
        %v288 = vlaneseq
        %v289 = vshrl.u32 %v288, 7
        %v290 = vsub.s32 0, %v289
        %v291 = vrot.slane %v287, %v290
        %v292 = vmul.f32 %v225, %v291
        %v293 = vmul.f32 %v226, %v291
        %v294 = vmul.f32 %v228, %v291
        %v295 = vmul.f32 %v229, %v291
        %v296 = vmul.f32 %v231, %v291
        %v297 = vmul.f32 %v232, %v291
        %v298 = vmul.f32 %v234, %v291
        %v299 = vmul.f32 %v235, %v291
        %v300 = vmul.f32 %v237, %v291
        %v301 = vmul.f32 %v238, %v291
        %v302 = vmul.f32 %v240, %v291
        %v303 = vmul.f32 %v241, %v291
        %v304 = vmul.f32 %v243, %v291
        %v305 = vmul.f32 %v244, %v291
        %v306 = vmul.f32 %v246, %v291
        %v307 = vmul.f32 %v247, %v291
        %v308 = vmul.f32 %v249, %v291
        %v309 = vmul.f32 %v250, %v291
        %v310 = vmul.f32 %v252, %v291
        %v311 = vmul.f32 %v253, %v291
        %v312 = vmul.f32 %v255, %v291
        %v313 = vmul.f32 %v256, %v291
        %v314 = vmul.f32 %v258, %v291
        %v315 = vmul.f32 %v259, %v291
        %v316 = vmul.f32 %v261, %v291
        %v317 = vmul.f32 %v262, %v291
        %v318 = vmul.f32 %v264, %v291
        %v319 = vmul.f32 %v265, %v291
        %v320 = vmul.f32 %v267, %v291
        %v321 = vmul.f32 %v268, %v291
        %v322 = vmul.f32 %v270, %v291
        %v323 = vmul.f32 %v271, %v291
        %v324 = vadd.f32 %v286, %v292
        %v325 = vadd.f32 %v286, %v293
        %v326 = vadd.f32 %v286, %v294
        %v327 = vadd.f32 %v286, %v295
        %v328 = vadd.f32 %v286, %v296
        %v329 = vadd.f32 %v286, %v297
        %v330 = vadd.f32 %v286, %v298
        %v331 = vadd.f32 %v286, %v299
        %v332 = vadd.f32 %v286, %v300
        %v333 = vadd.f32 %v286, %v301
        %v334 = vadd.f32 %v286, %v302
        %v335 = vadd.f32 %v286, %v303
        %v336 = vadd.f32 %v286, %v304
        %v337 = vadd.f32 %v286, %v305
        %v338 = vadd.f32 %v286, %v306
        %v339 = vadd.f32 %v286, %v307
        %v340 = vadd.f32 %v286, %v308
        %v341 = vadd.f32 %v286, %v309
        %v342 = vadd.f32 %v286, %v310
        %v343 = vadd.f32 %v286, %v311
        %v344 = vadd.f32 %v286, %v312
        %v345 = vadd.f32 %v286, %v313
        %v346 = vadd.f32 %v286, %v314
        %v347 = vadd.f32 %v286, %v315
        %v348 = vadd.f32 %v286, %v316
        %v349 = vadd.f32 %v286, %v317
        %v350 = vadd.f32 %v286, %v318
        %v351 = vadd.f32 %v286, %v319
        %v352 = vadd.f32 %v286, %v320
        %v353 = vadd.f32 %v286, %v321
        %v354 = vadd.f32 %v286, %v322
        %v355 = vadd.f32 %v286, %v323
        %v356 = vld [vmem:[%s221 + $0x1] sm:$0x1]
        %v357 = vlaneseq
        %v358 = vshrl.u32 %v357, 7
        %v359 = vsub.s32 0, %v358
        %v360 = vrot.slane %v356, %v359
        %v361 = vmul.f32 %v225, %v360
        %v362 = vmul.f32 %v226, %v360
        %v363 = vmul.f32 %v227, %v360
        %v364 = vmul.f32 %v228, %v360
        %v365 = vmul.f32 %v229, %v360
        %v366 = vmul.f32 %v230, %v360
        %v367 = vmul.f32 %v231, %v360
        %v368 = vmul.f32 %v232, %v360
        %v369 = vmul.f32 %v233, %v360
        %v370 = vmul.f32 %v234, %v360
        %v371 = vmul.f32 %v235, %v360
        %v372 = vmul.f32 %v236, %v360
        %v373 = vmul.f32 %v237, %v360
        %v374 = vmul.f32 %v238, %v360
        %v375 = vmul.f32 %v239, %v360
        %v376 = vmul.f32 %v240, %v360
        %v377 = vmul.f32 %v241, %v360
        %v378 = vmul.f32 %v242, %v360
        %v379 = vmul.f32 %v243, %v360
        %v380 = vmul.f32 %v244, %v360
        %v381 = vmul.f32 %v245, %v360
        %v382 = vmul.f32 %v246, %v360
        %v383 = vmul.f32 %v247, %v360
        %v384 = vmul.f32 %v248, %v360
        %v385 = vmul.f32 %v249, %v360
        %v386 = vmul.f32 %v250, %v360
        %v387 = vmul.f32 %v251, %v360
        %v388 = vmul.f32 %v252, %v360
        %v389 = vmul.f32 %v253, %v360
        %v390 = vmul.f32 %v254, %v360
        %v391 = vmul.f32 %v255, %v360
        %v392 = vmul.f32 %v256, %v360
        %v393 = vmul.f32 %v257, %v360
        %v394 = vmul.f32 %v258, %v360
        %v395 = vmul.f32 %v259, %v360
        %v396 = vmul.f32 %v260, %v360
        %v397 = vmul.f32 %v261, %v360
        %v398 = vmul.f32 %v262, %v360
        %v399 = vmul.f32 %v263, %v360
        %v400 = vmul.f32 %v264, %v360
        %v401 = vmul.f32 %v265, %v360
        %v402 = vmul.f32 %v266, %v360
        %v403 = vmul.f32 %v267, %v360
        %v404 = vmul.f32 %v268, %v360
        %v405 = vmul.f32 %v269, %v360
        %v406 = vmul.f32 %v270, %v360
        %v407 = vmul.f32 %v271, %v360
        %v408 = vmul.f32 %v272, %v360
        %vm457 = vcmask 1046528
        %v458 = vrot.slane %v361, 1
        %v459 = vrot.slane %v362, 1
        %v460 = vsel %vm457, %v458, %v459
        %v461 = vrot.slane %v363, 1
        %v462 = vsel %vm457, %v459, %v461
        %v463 = vrot.slane %v364, 1
        %v464 = vrot.slane %v365, 1
        %v465 = vsel %vm457, %v463, %v464
        %v466 = vrot.slane %v366, 1
        %v467 = vsel %vm457, %v464, %v466
        %v468 = vrot.slane %v367, 1
        %v469 = vrot.slane %v368, 1
        %v470 = vsel %vm457, %v468, %v469
        %v471 = vrot.slane %v369, 1
        %v472 = vsel %vm457, %v469, %v471
        %v473 = vrot.slane %v370, 1
        %v474 = vrot.slane %v371, 1
        %v475 = vsel %vm457, %v473, %v474
        %v476 = vrot.slane %v372, 1
        %v477 = vsel %vm457, %v474, %v476
        %v478 = vrot.slane %v373, 1
        %v479 = vrot.slane %v374, 1
        %v480 = vsel %vm457, %v478, %v479
        %v481 = vrot.slane %v375, 1
        %v482 = vsel %vm457, %v479, %v481
        %v483 = vrot.slane %v376, 1
        %v484 = vrot.slane %v377, 1
        %v485 = vsel %vm457, %v483, %v484
        %v486 = vrot.slane %v378, 1
        %v487 = vsel %vm457, %v484, %v486
        %v488 = vrot.slane %v379, 1
        %v489 = vrot.slane %v380, 1
        %v490 = vsel %vm457, %v488, %v489
        %v491 = vrot.slane %v381, 1
        %v492 = vsel %vm457, %v489, %v491
        %v493 = vrot.slane %v382, 1
        %v494 = vrot.slane %v383, 1
        %v495 = vsel %vm457, %v493, %v494
        %v496 = vrot.slane %v384, 1
        %v497 = vsel %vm457, %v494, %v496
        %v498 = vrot.slane %v385, 1
        %v499 = vrot.slane %v386, 1
        %v500 = vsel %vm457, %v498, %v499
        %v501 = vrot.slane %v387, 1
        %v502 = vsel %vm457, %v499, %v501
        %v503 = vrot.slane %v388, 1
        %v504 = vrot.slane %v389, 1
        %v505 = vsel %vm457, %v503, %v504
        %v506 = vrot.slane %v390, 1
        %v507 = vsel %vm457, %v504, %v506
        %v508 = vrot.slane %v391, 1
        %v509 = vrot.slane %v392, 1
        %v510 = vsel %vm457, %v508, %v509
        %v511 = vrot.slane %v393, 1
        %v512 = vsel %vm457, %v509, %v511
        %v513 = vrot.slane %v394, 1
        %v514 = vrot.slane %v395, 1
        %v515 = vsel %vm457, %v513, %v514
        %v516 = vrot.slane %v396, 1
        %v517 = vsel %vm457, %v514, %v516
        %v518 = vrot.slane %v397, 1
        %v519 = vrot.slane %v398, 1
        %v520 = vsel %vm457, %v518, %v519
        %v521 = vrot.slane %v399, 1
        %v522 = vsel %vm457, %v519, %v521
        %v523 = vrot.slane %v400, 1
        %v524 = vrot.slane %v401, 1
        %v525 = vsel %vm457, %v523, %v524
        %v526 = vrot.slane %v402, 1
        %v527 = vsel %vm457, %v524, %v526
        %v528 = vrot.slane %v403, 1
        %v529 = vrot.slane %v404, 1
        %v530 = vsel %vm457, %v528, %v529
        %v531 = vrot.slane %v405, 1
        %v532 = vsel %vm457, %v529, %v531
        %v533 = vrot.slane %v406, 1
        %v534 = vrot.slane %v407, 1
        %v535 = vsel %vm457, %v533, %v534
        %v536 = vrot.slane %v408, 1
        %v537 = vsel %vm457, %v534, %v536
        %v570 = vadd.f32 %v324, %v460
        %v571 = vadd.f32 %v325, %v462
        %v572 = vadd.f32 %v326, %v465
        %v573 = vadd.f32 %v327, %v467
        %v574 = vadd.f32 %v328, %v470
        %v575 = vadd.f32 %v329, %v472
        %v576 = vadd.f32 %v330, %v475
        %v577 = vadd.f32 %v331, %v477
        %v578 = vadd.f32 %v332, %v480
        %v579 = vadd.f32 %v333, %v482
        %v580 = vadd.f32 %v334, %v485
        %v581 = vadd.f32 %v335, %v487
        %v582 = vadd.f32 %v336, %v490
        %v583 = vadd.f32 %v337, %v492
        %v584 = vadd.f32 %v338, %v495
        %v585 = vadd.f32 %v339, %v497
        %v586 = vadd.f32 %v340, %v500
        %v587 = vadd.f32 %v341, %v502
        %v588 = vadd.f32 %v342, %v505
        %v589 = vadd.f32 %v343, %v507
        %v590 = vadd.f32 %v344, %v510
        %v591 = vadd.f32 %v345, %v512
        %v592 = vadd.f32 %v346, %v515
        %v593 = vadd.f32 %v347, %v517
        %v594 = vadd.f32 %v348, %v520
        %v595 = vadd.f32 %v349, %v522
        %v596 = vadd.f32 %v350, %v525
        %v597 = vadd.f32 %v351, %v527
        %v598 = vadd.f32 %v352, %v530
        %v599 = vadd.f32 %v353, %v532
        %v600 = vadd.f32 %v354, %v535
        %v601 = vadd.f32 %v355, %v537
        %v602 = vld [vmem:[%s221 + $0x2] sm:$0x1]
        %v603 = vlaneseq
        %v604 = vshrl.u32 %v603, 7
        %v605 = vsub.s32 0, %v604
        %v606 = vrot.slane %v602, %v605
        %v607 = vmul.f32 %v225, %v606
        %v608 = vmul.f32 %v226, %v606
        %v609 = vmul.f32 %v227, %v606
        %v610 = vmul.f32 %v228, %v606
        %v611 = vmul.f32 %v229, %v606
        %v612 = vmul.f32 %v230, %v606
        %v613 = vmul.f32 %v231, %v606
        %v614 = vmul.f32 %v232, %v606
        %v615 = vmul.f32 %v233, %v606
        %v616 = vmul.f32 %v234, %v606
        %v617 = vmul.f32 %v235, %v606
        %v618 = vmul.f32 %v236, %v606
        %v619 = vmul.f32 %v237, %v606
        %v620 = vmul.f32 %v238, %v606
        %v621 = vmul.f32 %v239, %v606
        %v622 = vmul.f32 %v240, %v606
        %v623 = vmul.f32 %v241, %v606
        %v624 = vmul.f32 %v242, %v606
        %v625 = vmul.f32 %v243, %v606
        %v626 = vmul.f32 %v244, %v606
        %v627 = vmul.f32 %v245, %v606
        %v628 = vmul.f32 %v246, %v606
        %v629 = vmul.f32 %v247, %v606
        %v630 = vmul.f32 %v248, %v606
        %v631 = vmul.f32 %v249, %v606
        %v632 = vmul.f32 %v250, %v606
        %v633 = vmul.f32 %v251, %v606
        %v634 = vmul.f32 %v252, %v606
        %v635 = vmul.f32 %v253, %v606
        %v636 = vmul.f32 %v254, %v606
        %v637 = vmul.f32 %v255, %v606
        %v638 = vmul.f32 %v256, %v606
        %v639 = vmul.f32 %v257, %v606
        %v640 = vmul.f32 %v258, %v606
        %v641 = vmul.f32 %v259, %v606
        %v642 = vmul.f32 %v260, %v606
        %v643 = vmul.f32 %v261, %v606
        %v644 = vmul.f32 %v262, %v606
        %v645 = vmul.f32 %v263, %v606
        %v646 = vmul.f32 %v264, %v606
        %v647 = vmul.f32 %v265, %v606
        %v648 = vmul.f32 %v266, %v606
        %v649 = vmul.f32 %v267, %v606
        %v650 = vmul.f32 %v268, %v606
        %v651 = vmul.f32 %v269, %v606
        %v652 = vmul.f32 %v270, %v606
        %v653 = vmul.f32 %v271, %v606
        %v654 = vmul.f32 %v272, %v606
        %vm703 = vcmask 1045504
        %v704 = vrot.slane %v607, 2
        %v705 = vrot.slane %v608, 2
        %v706 = vsel %vm703, %v704, %v705
        %v707 = vrot.slane %v609, 2
        %v708 = vsel %vm703, %v705, %v707
        %v709 = vrot.slane %v610, 2
        %v710 = vrot.slane %v611, 2
        %v711 = vsel %vm703, %v709, %v710
        %v712 = vrot.slane %v612, 2
        %v713 = vsel %vm703, %v710, %v712
        %v714 = vrot.slane %v613, 2
        %v715 = vrot.slane %v614, 2
        %v716 = vsel %vm703, %v714, %v715
        %v717 = vrot.slane %v615, 2
        %v718 = vsel %vm703, %v715, %v717
        %v719 = vrot.slane %v616, 2
        %v720 = vrot.slane %v617, 2
        %v721 = vsel %vm703, %v719, %v720
        %v722 = vrot.slane %v618, 2
        %v723 = vsel %vm703, %v720, %v722
        %v724 = vrot.slane %v619, 2
        %v725 = vrot.slane %v620, 2
        %v726 = vsel %vm703, %v724, %v725
        %v727 = vrot.slane %v621, 2
        %v728 = vsel %vm703, %v725, %v727
        %v729 = vrot.slane %v622, 2
        %v730 = vrot.slane %v623, 2
        %v731 = vsel %vm703, %v729, %v730
        %v732 = vrot.slane %v624, 2
        %v733 = vsel %vm703, %v730, %v732
        %v734 = vrot.slane %v625, 2
        %v735 = vrot.slane %v626, 2
        %v736 = vsel %vm703, %v734, %v735
        %v737 = vrot.slane %v627, 2
        %v738 = vsel %vm703, %v735, %v737
        %v739 = vrot.slane %v628, 2
        %v740 = vrot.slane %v629, 2
        %v741 = vsel %vm703, %v739, %v740
        %v742 = vrot.slane %v630, 2
        %v743 = vsel %vm703, %v740, %v742
        %v744 = vrot.slane %v631, 2
        %v745 = vrot.slane %v632, 2
        %v746 = vsel %vm703, %v744, %v745
        %v747 = vrot.slane %v633, 2
        %v748 = vsel %vm703, %v745, %v747
        %v749 = vrot.slane %v634, 2
        %v750 = vrot.slane %v635, 2
        %v751 = vsel %vm703, %v749, %v750
        %v752 = vrot.slane %v636, 2
        %v753 = vsel %vm703, %v750, %v752
        %v754 = vrot.slane %v637, 2
        %v755 = vrot.slane %v638, 2
        %v756 = vsel %vm703, %v754, %v755
        %v757 = vrot.slane %v639, 2
        %v758 = vsel %vm703, %v755, %v757
        %v759 = vrot.slane %v640, 2
        %v760 = vrot.slane %v641, 2
        %v761 = vsel %vm703, %v759, %v760
        %v762 = vrot.slane %v642, 2
        %v763 = vsel %vm703, %v760, %v762
        %v764 = vrot.slane %v643, 2
        %v765 = vrot.slane %v644, 2
        %v766 = vsel %vm703, %v764, %v765
        %v767 = vrot.slane %v645, 2
        %v768 = vsel %vm703, %v765, %v767
        %v769 = vrot.slane %v646, 2
        %v770 = vrot.slane %v647, 2
        %v771 = vsel %vm703, %v769, %v770
        %v772 = vrot.slane %v648, 2
        %v773 = vsel %vm703, %v770, %v772
        %v774 = vrot.slane %v649, 2
        %v775 = vrot.slane %v650, 2
        %v776 = vsel %vm703, %v774, %v775
        %v777 = vrot.slane %v651, 2
        %v778 = vsel %vm703, %v775, %v777
        %v779 = vrot.slane %v652, 2
        %v780 = vrot.slane %v653, 2
        %v781 = vsel %vm703, %v779, %v780
        %v782 = vrot.slane %v654, 2
        %v783 = vsel %vm703, %v780, %v782
        %v816 = vadd.f32 %v570, %v706
        %v817 = vadd.f32 %v571, %v708
        %v818 = vadd.f32 %v572, %v711
        %v819 = vadd.f32 %v573, %v713
        %v820 = vadd.f32 %v574, %v716
        %v821 = vadd.f32 %v575, %v718
        %v822 = vadd.f32 %v576, %v721
        %v823 = vadd.f32 %v577, %v723
        %v824 = vadd.f32 %v578, %v726
        %v825 = vadd.f32 %v579, %v728
        %v826 = vadd.f32 %v580, %v731
        %v827 = vadd.f32 %v581, %v733
        %v828 = vadd.f32 %v582, %v736
        %v829 = vadd.f32 %v583, %v738
        %v830 = vadd.f32 %v584, %v741
        %v831 = vadd.f32 %v585, %v743
        %v832 = vadd.f32 %v586, %v746
        %v833 = vadd.f32 %v587, %v748
        %v834 = vadd.f32 %v588, %v751
        %v835 = vadd.f32 %v589, %v753
        %v836 = vadd.f32 %v590, %v756
        %v837 = vadd.f32 %v591, %v758
        %v838 = vadd.f32 %v592, %v761
        %v839 = vadd.f32 %v593, %v763
        %v840 = vadd.f32 %v594, %v766
        %v841 = vadd.f32 %v595, %v768
        %v842 = vadd.f32 %v596, %v771
        %v843 = vadd.f32 %v597, %v773
        %v844 = vadd.f32 %v598, %v776
        %v845 = vadd.f32 %v599, %v778
        %v846 = vadd.f32 %v600, %v781
        %v847 = vadd.f32 %v601, %v783
        %v848 = vld [vmem:[%s221 + $0x3] sm:$0x1]
        %v849 = vlaneseq
        %v850 = vshrl.u32 %v849, 7
        %v851 = vsub.s32 0, %v850
        %v852 = vrot.slane %v848, %v851
        %v853 = vmul.f32 %v228, %v852
        %v854 = vmul.f32 %v229, %v852
        %v855 = vmul.f32 %v231, %v852
        %v856 = vmul.f32 %v232, %v852
        %v857 = vmul.f32 %v234, %v852
        %v858 = vmul.f32 %v235, %v852
        %v859 = vmul.f32 %v237, %v852
        %v860 = vmul.f32 %v238, %v852
        %v861 = vmul.f32 %v240, %v852
        %v862 = vmul.f32 %v241, %v852
        %v863 = vmul.f32 %v243, %v852
        %v864 = vmul.f32 %v244, %v852
        %v865 = vmul.f32 %v246, %v852
        %v866 = vmul.f32 %v247, %v852
        %v867 = vmul.f32 %v249, %v852
        %v868 = vmul.f32 %v250, %v852
        %v869 = vmul.f32 %v252, %v852
        %v870 = vmul.f32 %v253, %v852
        %v871 = vmul.f32 %v255, %v852
        %v872 = vmul.f32 %v256, %v852
        %v873 = vmul.f32 %v258, %v852
        %v874 = vmul.f32 %v259, %v852
        %v875 = vmul.f32 %v261, %v852
        %v876 = vmul.f32 %v262, %v852
        %v877 = vmul.f32 %v264, %v852
        %v878 = vmul.f32 %v265, %v852
        %v879 = vmul.f32 %v267, %v852
        %v880 = vmul.f32 %v268, %v852
        %v881 = vmul.f32 %v270, %v852
        %v882 = vmul.f32 %v271, %v852
        %v883 = vmul.f32 %v273, %v852
        %v884 = vmul.f32 %v274, %v852
        %v885 = vadd.f32 %v816, %v853
        %v886 = vadd.f32 %v817, %v854
        %v887 = vadd.f32 %v818, %v855
        %v888 = vadd.f32 %v819, %v856
        %v889 = vadd.f32 %v820, %v857
        %v890 = vadd.f32 %v821, %v858
        %v891 = vadd.f32 %v822, %v859
        %v892 = vadd.f32 %v823, %v860
        %v893 = vadd.f32 %v824, %v861
        %v894 = vadd.f32 %v825, %v862
        %v895 = vadd.f32 %v826, %v863
        %v896 = vadd.f32 %v827, %v864
        %v897 = vadd.f32 %v828, %v865
        %v898 = vadd.f32 %v829, %v866
        %v899 = vadd.f32 %v830, %v867
        %v900 = vadd.f32 %v831, %v868
        %v901 = vadd.f32 %v832, %v869
        %v902 = vadd.f32 %v833, %v870
        %v903 = vadd.f32 %v834, %v871
        %v904 = vadd.f32 %v835, %v872
        %v905 = vadd.f32 %v836, %v873
        %v906 = vadd.f32 %v837, %v874
        %v907 = vadd.f32 %v838, %v875
        %v908 = vadd.f32 %v839, %v876
        %v909 = vadd.f32 %v840, %v877
        %v910 = vadd.f32 %v841, %v878
        %v911 = vadd.f32 %v842, %v879
        %v912 = vadd.f32 %v843, %v880
        %v913 = vadd.f32 %v844, %v881
        %v914 = vadd.f32 %v845, %v882
        %v915 = vadd.f32 %v846, %v883
        %v916 = vadd.f32 %v847, %v884
        %v917 = vld [vmem:[%s221 + $0x4] sm:$0x1]
        %v918 = vlaneseq
        %v919 = vshrl.u32 %v918, 7
        %v920 = vsub.s32 0, %v919
        %v921 = vrot.slane %v917, %v920
        %v922 = vmul.f32 %v228, %v921
        %v923 = vmul.f32 %v229, %v921
        %v924 = vmul.f32 %v230, %v921
        %v925 = vmul.f32 %v231, %v921
        %v926 = vmul.f32 %v232, %v921
        %v927 = vmul.f32 %v233, %v921
        %v928 = vmul.f32 %v234, %v921
        %v929 = vmul.f32 %v235, %v921
        %v930 = vmul.f32 %v236, %v921
        %v931 = vmul.f32 %v237, %v921
        %v932 = vmul.f32 %v238, %v921
        %v933 = vmul.f32 %v239, %v921
        %v934 = vmul.f32 %v240, %v921
        %v935 = vmul.f32 %v241, %v921
        %v936 = vmul.f32 %v242, %v921
        %v937 = vmul.f32 %v243, %v921
        %v938 = vmul.f32 %v244, %v921
        %v939 = vmul.f32 %v245, %v921
        %v940 = vmul.f32 %v246, %v921
        %v941 = vmul.f32 %v247, %v921
        %v942 = vmul.f32 %v248, %v921
        %v943 = vmul.f32 %v249, %v921
        %v944 = vmul.f32 %v250, %v921
        %v945 = vmul.f32 %v251, %v921
        %v946 = vmul.f32 %v252, %v921
        %v947 = vmul.f32 %v253, %v921
        %v948 = vmul.f32 %v254, %v921
        %v949 = vmul.f32 %v255, %v921
        %v950 = vmul.f32 %v256, %v921
        %v951 = vmul.f32 %v257, %v921
        %v952 = vmul.f32 %v258, %v921
        %v953 = vmul.f32 %v259, %v921
        %v954 = vmul.f32 %v260, %v921
        %v955 = vmul.f32 %v261, %v921
        %v956 = vmul.f32 %v262, %v921
        %v957 = vmul.f32 %v263, %v921
        %v958 = vmul.f32 %v264, %v921
        %v959 = vmul.f32 %v265, %v921
        %v960 = vmul.f32 %v266, %v921
        %v961 = vmul.f32 %v267, %v921
        %v962 = vmul.f32 %v268, %v921
        %v963 = vmul.f32 %v269, %v921
        %v964 = vmul.f32 %v270, %v921
        %v965 = vmul.f32 %v271, %v921
        %v966 = vmul.f32 %v272, %v921
        %v967 = vmul.f32 %v273, %v921
        %v968 = vmul.f32 %v274, %v921
        %v969 = vmul.f32 %v275, %v921
        %v1018 = vrot.slane %v922, 1
        %v1019 = vrot.slane %v923, 1
        %v1020 = vsel %vm457, %v1018, %v1019
        %v1021 = vrot.slane %v924, 1
        %v1022 = vsel %vm457, %v1019, %v1021
        %v1023 = vrot.slane %v925, 1
        %v1024 = vrot.slane %v926, 1
        %v1025 = vsel %vm457, %v1023, %v1024
        %v1026 = vrot.slane %v927, 1
        %v1027 = vsel %vm457, %v1024, %v1026
        %v1028 = vrot.slane %v928, 1
        %v1029 = vrot.slane %v929, 1
        %v1030 = vsel %vm457, %v1028, %v1029
        %v1031 = vrot.slane %v930, 1
        %v1032 = vsel %vm457, %v1029, %v1031
        %v1033 = vrot.slane %v931, 1
        %v1034 = vrot.slane %v932, 1
        %v1035 = vsel %vm457, %v1033, %v1034
        %v1036 = vrot.slane %v933, 1
        %v1037 = vsel %vm457, %v1034, %v1036
        %v1038 = vrot.slane %v934, 1
        %v1039 = vrot.slane %v935, 1
        %v1040 = vsel %vm457, %v1038, %v1039
        %v1041 = vrot.slane %v936, 1
        %v1042 = vsel %vm457, %v1039, %v1041
        %v1043 = vrot.slane %v937, 1
        %v1044 = vrot.slane %v938, 1
        %v1045 = vsel %vm457, %v1043, %v1044
        %v1046 = vrot.slane %v939, 1
        %v1047 = vsel %vm457, %v1044, %v1046
        %v1048 = vrot.slane %v940, 1
        %v1049 = vrot.slane %v941, 1
        %v1050 = vsel %vm457, %v1048, %v1049
        %v1051 = vrot.slane %v942, 1
        %v1052 = vsel %vm457, %v1049, %v1051
        %v1053 = vrot.slane %v943, 1
        %v1054 = vrot.slane %v944, 1
        %v1055 = vsel %vm457, %v1053, %v1054
        %v1056 = vrot.slane %v945, 1
        %v1057 = vsel %vm457, %v1054, %v1056
        %v1058 = vrot.slane %v946, 1
        %v1059 = vrot.slane %v947, 1
        %v1060 = vsel %vm457, %v1058, %v1059
        %v1061 = vrot.slane %v948, 1
        %v1062 = vsel %vm457, %v1059, %v1061
        %v1063 = vrot.slane %v949, 1
        %v1064 = vrot.slane %v950, 1
        %v1065 = vsel %vm457, %v1063, %v1064
        %v1066 = vrot.slane %v951, 1
        %v1067 = vsel %vm457, %v1064, %v1066
        %v1068 = vrot.slane %v952, 1
        %v1069 = vrot.slane %v953, 1
        %v1070 = vsel %vm457, %v1068, %v1069
        %v1071 = vrot.slane %v954, 1
        %v1072 = vsel %vm457, %v1069, %v1071
        %v1073 = vrot.slane %v955, 1
        %v1074 = vrot.slane %v956, 1
        %v1075 = vsel %vm457, %v1073, %v1074
        %v1076 = vrot.slane %v957, 1
        %v1077 = vsel %vm457, %v1074, %v1076
        %v1078 = vrot.slane %v958, 1
        %v1079 = vrot.slane %v959, 1
        %v1080 = vsel %vm457, %v1078, %v1079
        %v1081 = vrot.slane %v960, 1
        %v1082 = vsel %vm457, %v1079, %v1081
        %v1083 = vrot.slane %v961, 1
        %v1084 = vrot.slane %v962, 1
        %v1085 = vsel %vm457, %v1083, %v1084
        %v1086 = vrot.slane %v963, 1
        %v1087 = vsel %vm457, %v1084, %v1086
        %v1088 = vrot.slane %v964, 1
        %v1089 = vrot.slane %v965, 1
        %v1090 = vsel %vm457, %v1088, %v1089
        %v1091 = vrot.slane %v966, 1
        %v1092 = vsel %vm457, %v1089, %v1091
        %v1093 = vrot.slane %v967, 1
        %v1094 = vrot.slane %v968, 1
        %v1095 = vsel %vm457, %v1093, %v1094
        %v1096 = vrot.slane %v969, 1
        %v1097 = vsel %vm457, %v1094, %v1096
        %v1130 = vadd.f32 %v885, %v1020
        %v1131 = vadd.f32 %v886, %v1022
        %v1132 = vadd.f32 %v887, %v1025
        %v1133 = vadd.f32 %v888, %v1027
        %v1134 = vadd.f32 %v889, %v1030
        %v1135 = vadd.f32 %v890, %v1032
        %v1136 = vadd.f32 %v891, %v1035
        %v1137 = vadd.f32 %v892, %v1037
        %v1138 = vadd.f32 %v893, %v1040
        %v1139 = vadd.f32 %v894, %v1042
        %v1140 = vadd.f32 %v895, %v1045
        %v1141 = vadd.f32 %v896, %v1047
        %v1142 = vadd.f32 %v897, %v1050
        %v1143 = vadd.f32 %v898, %v1052
        %v1144 = vadd.f32 %v899, %v1055
        %v1145 = vadd.f32 %v900, %v1057
        %v1146 = vadd.f32 %v901, %v1060
        %v1147 = vadd.f32 %v902, %v1062
        %v1148 = vadd.f32 %v903, %v1065
        %v1149 = vadd.f32 %v904, %v1067
        %v1150 = vadd.f32 %v905, %v1070
        %v1151 = vadd.f32 %v906, %v1072
        %v1152 = vadd.f32 %v907, %v1075
        %v1153 = vadd.f32 %v908, %v1077
        %v1154 = vadd.f32 %v909, %v1080
        %v1155 = vadd.f32 %v910, %v1082
        %v1156 = vadd.f32 %v911, %v1085
        %v1157 = vadd.f32 %v912, %v1087
        %v1158 = vadd.f32 %v913, %v1090
        %v1159 = vadd.f32 %v914, %v1092
        %v1160 = vadd.f32 %v915, %v1095
        %v1161 = vadd.f32 %v916, %v1097
        %v1162 = vld [vmem:[%s221 + $0x5] sm:$0x1]
        %v1163 = vlaneseq
        %v1164 = vshrl.u32 %v1163, 7
        %v1165 = vsub.s32 0, %v1164
        %v1166 = vrot.slane %v1162, %v1165
        %v1167 = vmul.f32 %v228, %v1166
        %v1168 = vmul.f32 %v229, %v1166
        %v1169 = vmul.f32 %v230, %v1166
        %v1170 = vmul.f32 %v231, %v1166
        %v1171 = vmul.f32 %v232, %v1166
        %v1172 = vmul.f32 %v233, %v1166
        %v1173 = vmul.f32 %v234, %v1166
        %v1174 = vmul.f32 %v235, %v1166
        %v1175 = vmul.f32 %v236, %v1166
        %v1176 = vmul.f32 %v237, %v1166
        %v1177 = vmul.f32 %v238, %v1166
        %v1178 = vmul.f32 %v239, %v1166
        %v1179 = vmul.f32 %v240, %v1166
        %v1180 = vmul.f32 %v241, %v1166
        %v1181 = vmul.f32 %v242, %v1166
        %v1182 = vmul.f32 %v243, %v1166
        %v1183 = vmul.f32 %v244, %v1166
        %v1184 = vmul.f32 %v245, %v1166
        %v1185 = vmul.f32 %v246, %v1166
        %v1186 = vmul.f32 %v247, %v1166
        %v1187 = vmul.f32 %v248, %v1166
        %v1188 = vmul.f32 %v249, %v1166
        %v1189 = vmul.f32 %v250, %v1166
        %v1190 = vmul.f32 %v251, %v1166
        %v1191 = vmul.f32 %v252, %v1166
        %v1192 = vmul.f32 %v253, %v1166
        %v1193 = vmul.f32 %v254, %v1166
        %v1194 = vmul.f32 %v255, %v1166
        %v1195 = vmul.f32 %v256, %v1166
        %v1196 = vmul.f32 %v257, %v1166
        %v1197 = vmul.f32 %v258, %v1166
        %v1198 = vmul.f32 %v259, %v1166
        %v1199 = vmul.f32 %v260, %v1166
        %v1200 = vmul.f32 %v261, %v1166
        %v1201 = vmul.f32 %v262, %v1166
        %v1202 = vmul.f32 %v263, %v1166
        %v1203 = vmul.f32 %v264, %v1166
        %v1204 = vmul.f32 %v265, %v1166
        %v1205 = vmul.f32 %v266, %v1166
        %v1206 = vmul.f32 %v267, %v1166
        %v1207 = vmul.f32 %v268, %v1166
        %v1208 = vmul.f32 %v269, %v1166
        %v1209 = vmul.f32 %v270, %v1166
        %v1210 = vmul.f32 %v271, %v1166
        %v1211 = vmul.f32 %v272, %v1166
        %v1212 = vmul.f32 %v273, %v1166
        %v1213 = vmul.f32 %v274, %v1166
        %v1214 = vmul.f32 %v275, %v1166
        %v1263 = vrot.slane %v1167, 2
        %v1264 = vrot.slane %v1168, 2
        %v1265 = vsel %vm703, %v1263, %v1264
        %v1266 = vrot.slane %v1169, 2
        %v1267 = vsel %vm703, %v1264, %v1266
        %v1268 = vrot.slane %v1170, 2
        %v1269 = vrot.slane %v1171, 2
        %v1270 = vsel %vm703, %v1268, %v1269
        %v1271 = vrot.slane %v1172, 2
        %v1272 = vsel %vm703, %v1269, %v1271
        %v1273 = vrot.slane %v1173, 2
        %v1274 = vrot.slane %v1174, 2
        %v1275 = vsel %vm703, %v1273, %v1274
        %v1276 = vrot.slane %v1175, 2
        %v1277 = vsel %vm703, %v1274, %v1276
        %v1278 = vrot.slane %v1176, 2
        %v1279 = vrot.slane %v1177, 2
        %v1280 = vsel %vm703, %v1278, %v1279
        %v1281 = vrot.slane %v1178, 2
        %v1282 = vsel %vm703, %v1279, %v1281
        %v1283 = vrot.slane %v1179, 2
        %v1284 = vrot.slane %v1180, 2
        %v1285 = vsel %vm703, %v1283, %v1284
        %v1286 = vrot.slane %v1181, 2
        %v1287 = vsel %vm703, %v1284, %v1286
        %v1288 = vrot.slane %v1182, 2
        %v1289 = vrot.slane %v1183, 2
        %v1290 = vsel %vm703, %v1288, %v1289
        %v1291 = vrot.slane %v1184, 2
        %v1292 = vsel %vm703, %v1289, %v1291
        %v1293 = vrot.slane %v1185, 2
        %v1294 = vrot.slane %v1186, 2
        %v1295 = vsel %vm703, %v1293, %v1294
        %v1296 = vrot.slane %v1187, 2
        %v1297 = vsel %vm703, %v1294, %v1296
        %v1298 = vrot.slane %v1188, 2
        %v1299 = vrot.slane %v1189, 2
        %v1300 = vsel %vm703, %v1298, %v1299
        %v1301 = vrot.slane %v1190, 2
        %v1302 = vsel %vm703, %v1299, %v1301
        %v1303 = vrot.slane %v1191, 2
        %v1304 = vrot.slane %v1192, 2
        %v1305 = vsel %vm703, %v1303, %v1304
        %v1306 = vrot.slane %v1193, 2
        %v1307 = vsel %vm703, %v1304, %v1306
        %v1308 = vrot.slane %v1194, 2
        %v1309 = vrot.slane %v1195, 2
        %v1310 = vsel %vm703, %v1308, %v1309
        %v1311 = vrot.slane %v1196, 2
        %v1312 = vsel %vm703, %v1309, %v1311
        %v1313 = vrot.slane %v1197, 2
        %v1314 = vrot.slane %v1198, 2
        %v1315 = vsel %vm703, %v1313, %v1314
        %v1316 = vrot.slane %v1199, 2
        %v1317 = vsel %vm703, %v1314, %v1316
        %v1318 = vrot.slane %v1200, 2
        %v1319 = vrot.slane %v1201, 2
        %v1320 = vsel %vm703, %v1318, %v1319
        %v1321 = vrot.slane %v1202, 2
        %v1322 = vsel %vm703, %v1319, %v1321
        %v1323 = vrot.slane %v1203, 2
        %v1324 = vrot.slane %v1204, 2
        %v1325 = vsel %vm703, %v1323, %v1324
        %v1326 = vrot.slane %v1205, 2
        %v1327 = vsel %vm703, %v1324, %v1326
        %v1328 = vrot.slane %v1206, 2
        %v1329 = vrot.slane %v1207, 2
        %v1330 = vsel %vm703, %v1328, %v1329
        %v1331 = vrot.slane %v1208, 2
        %v1332 = vsel %vm703, %v1329, %v1331
        %v1333 = vrot.slane %v1209, 2
        %v1334 = vrot.slane %v1210, 2
        %v1335 = vsel %vm703, %v1333, %v1334
        %v1336 = vrot.slane %v1211, 2
        %v1337 = vsel %vm703, %v1334, %v1336
        %v1338 = vrot.slane %v1212, 2
        %v1339 = vrot.slane %v1213, 2
        %v1340 = vsel %vm703, %v1338, %v1339
        %v1341 = vrot.slane %v1214, 2
        %v1342 = vsel %vm703, %v1339, %v1341
        %v1375 = vadd.f32 %v1130, %v1265
        %v1376 = vadd.f32 %v1131, %v1267
        %v1377 = vadd.f32 %v1132, %v1270
        %v1378 = vadd.f32 %v1133, %v1272
        %v1379 = vadd.f32 %v1134, %v1275
        %v1380 = vadd.f32 %v1135, %v1277
        %v1381 = vadd.f32 %v1136, %v1280
        %v1382 = vadd.f32 %v1137, %v1282
        %v1383 = vadd.f32 %v1138, %v1285
        %v1384 = vadd.f32 %v1139, %v1287
        %v1385 = vadd.f32 %v1140, %v1290
        %v1386 = vadd.f32 %v1141, %v1292
        %v1387 = vadd.f32 %v1142, %v1295
        %v1388 = vadd.f32 %v1143, %v1297
        %v1389 = vadd.f32 %v1144, %v1300
        %v1390 = vadd.f32 %v1145, %v1302
        %v1391 = vadd.f32 %v1146, %v1305
        %v1392 = vadd.f32 %v1147, %v1307
        %v1393 = vadd.f32 %v1148, %v1310
        %v1394 = vadd.f32 %v1149, %v1312
        %v1395 = vadd.f32 %v1150, %v1315
        %v1396 = vadd.f32 %v1151, %v1317
        %v1397 = vadd.f32 %v1152, %v1320
        %v1398 = vadd.f32 %v1153, %v1322
        %v1399 = vadd.f32 %v1154, %v1325
        %v1400 = vadd.f32 %v1155, %v1327
        %v1401 = vadd.f32 %v1156, %v1330
        %v1402 = vadd.f32 %v1157, %v1332
        %v1403 = vadd.f32 %v1158, %v1335
        %v1404 = vadd.f32 %v1159, %v1337
        %v1405 = vadd.f32 %v1160, %v1340
        %v1406 = vadd.f32 %v1161, %v1342
        %v1407 = vld [vmem:[%s221 + $0x6] sm:$0x1]
        %v1408 = vlaneseq
        %v1409 = vshrl.u32 %v1408, 7
        %v1410 = vsub.s32 0, %v1409
        %v1411 = vrot.slane %v1407, %v1410
        %v1412 = vmul.f32 %v231, %v1411
        %v1413 = vmul.f32 %v232, %v1411
        %v1414 = vmul.f32 %v234, %v1411
        %v1415 = vmul.f32 %v235, %v1411
        %v1416 = vmul.f32 %v237, %v1411
        %v1417 = vmul.f32 %v238, %v1411
        %v1418 = vmul.f32 %v240, %v1411
        %v1419 = vmul.f32 %v241, %v1411
        %v1420 = vmul.f32 %v243, %v1411
        %v1421 = vmul.f32 %v244, %v1411
        %v1422 = vmul.f32 %v246, %v1411
        %v1423 = vmul.f32 %v247, %v1411
        %v1424 = vmul.f32 %v249, %v1411
        %v1425 = vmul.f32 %v250, %v1411
        %v1426 = vmul.f32 %v252, %v1411
        %v1427 = vmul.f32 %v253, %v1411
        %v1428 = vmul.f32 %v255, %v1411
        %v1429 = vmul.f32 %v256, %v1411
        %v1430 = vmul.f32 %v258, %v1411
        %v1431 = vmul.f32 %v259, %v1411
        %v1432 = vmul.f32 %v261, %v1411
        %v1433 = vmul.f32 %v262, %v1411
        %v1434 = vmul.f32 %v264, %v1411
        %v1435 = vmul.f32 %v265, %v1411
        %v1436 = vmul.f32 %v267, %v1411
        %v1437 = vmul.f32 %v268, %v1411
        %v1438 = vmul.f32 %v270, %v1411
        %v1439 = vmul.f32 %v271, %v1411
        %v1440 = vmul.f32 %v273, %v1411
        %v1441 = vmul.f32 %v274, %v1411
        %v1442 = vmul.f32 %v276, %v1411
        %v1443 = vmul.f32 %v277, %v1411
        %v1444 = vadd.f32 %v1375, %v1412
        %v1445 = vadd.f32 %v1376, %v1413
        %v1446 = vadd.f32 %v1377, %v1414
        %v1447 = vadd.f32 %v1378, %v1415
        %v1448 = vadd.f32 %v1379, %v1416
        %v1449 = vadd.f32 %v1380, %v1417
        %v1450 = vadd.f32 %v1381, %v1418
        %v1451 = vadd.f32 %v1382, %v1419
        %v1452 = vadd.f32 %v1383, %v1420
        %v1453 = vadd.f32 %v1384, %v1421
        %v1454 = vadd.f32 %v1385, %v1422
        %v1455 = vadd.f32 %v1386, %v1423
        %v1456 = vadd.f32 %v1387, %v1424
        %v1457 = vadd.f32 %v1388, %v1425
        %v1458 = vadd.f32 %v1389, %v1426
        %v1459 = vadd.f32 %v1390, %v1427
        %v1460 = vadd.f32 %v1391, %v1428
        %v1461 = vadd.f32 %v1392, %v1429
        %v1462 = vadd.f32 %v1393, %v1430
        %v1463 = vadd.f32 %v1394, %v1431
        %v1464 = vadd.f32 %v1395, %v1432
        %v1465 = vadd.f32 %v1396, %v1433
        %v1466 = vadd.f32 %v1397, %v1434
        %v1467 = vadd.f32 %v1398, %v1435
        %v1468 = vadd.f32 %v1399, %v1436
        %v1469 = vadd.f32 %v1400, %v1437
        %v1470 = vadd.f32 %v1401, %v1438
        %v1471 = vadd.f32 %v1402, %v1439
        %v1472 = vadd.f32 %v1403, %v1440
        %v1473 = vadd.f32 %v1404, %v1441
        %v1474 = vadd.f32 %v1405, %v1442
        %v1475 = vadd.f32 %v1406, %v1443
        %v1476 = vld [vmem:[%s221 + $0x7] sm:$0x1]
        %v1477 = vlaneseq
        %v1478 = vshrl.u32 %v1477, 7
        %v1479 = vsub.s32 0, %v1478
        %v1480 = vrot.slane %v1476, %v1479
        %v1481 = vmul.f32 %v231, %v1480
        %v1482 = vmul.f32 %v232, %v1480
        %v1483 = vmul.f32 %v233, %v1480
        %v1484 = vmul.f32 %v234, %v1480
        %v1485 = vmul.f32 %v235, %v1480
        %v1486 = vmul.f32 %v236, %v1480
        %v1487 = vmul.f32 %v237, %v1480
        %v1488 = vmul.f32 %v238, %v1480
        %v1489 = vmul.f32 %v239, %v1480
        %v1490 = vmul.f32 %v240, %v1480
        %v1491 = vmul.f32 %v241, %v1480
        %v1492 = vmul.f32 %v242, %v1480
        %v1493 = vmul.f32 %v243, %v1480
        %v1494 = vmul.f32 %v244, %v1480
        %v1495 = vmul.f32 %v245, %v1480
        %v1496 = vmul.f32 %v246, %v1480
        %v1497 = vmul.f32 %v247, %v1480
        %v1498 = vmul.f32 %v248, %v1480
        %v1499 = vmul.f32 %v249, %v1480
        %v1500 = vmul.f32 %v250, %v1480
        %v1501 = vmul.f32 %v251, %v1480
        %v1502 = vmul.f32 %v252, %v1480
        %v1503 = vmul.f32 %v253, %v1480
        %v1504 = vmul.f32 %v254, %v1480
        %v1505 = vmul.f32 %v255, %v1480
        %v1506 = vmul.f32 %v256, %v1480
        %v1507 = vmul.f32 %v257, %v1480
        %v1508 = vmul.f32 %v258, %v1480
        %v1509 = vmul.f32 %v259, %v1480
        %v1510 = vmul.f32 %v260, %v1480
        %v1511 = vmul.f32 %v261, %v1480
        %v1512 = vmul.f32 %v262, %v1480
        %v1513 = vmul.f32 %v263, %v1480
        %v1514 = vmul.f32 %v264, %v1480
        %v1515 = vmul.f32 %v265, %v1480
        %v1516 = vmul.f32 %v266, %v1480
        %v1517 = vmul.f32 %v267, %v1480
        %v1518 = vmul.f32 %v268, %v1480
        %v1519 = vmul.f32 %v269, %v1480
        %v1520 = vmul.f32 %v270, %v1480
        %v1521 = vmul.f32 %v271, %v1480
        %v1522 = vmul.f32 %v272, %v1480
        %v1523 = vmul.f32 %v273, %v1480
        %v1524 = vmul.f32 %v274, %v1480
        %v1525 = vmul.f32 %v275, %v1480
        %v1526 = vmul.f32 %v276, %v1480
        %v1527 = vmul.f32 %v277, %v1480
        %v1528 = vmul.f32 %v278, %v1480
        %v1577 = vrot.slane %v1481, 1
        %v1578 = vrot.slane %v1482, 1
        %v1579 = vsel %vm457, %v1577, %v1578
        %v1580 = vrot.slane %v1483, 1
        %v1581 = vsel %vm457, %v1578, %v1580
        %v1582 = vrot.slane %v1484, 1
        %v1583 = vrot.slane %v1485, 1
        %v1584 = vsel %vm457, %v1582, %v1583
        %v1585 = vrot.slane %v1486, 1
        %v1586 = vsel %vm457, %v1583, %v1585
        %v1587 = vrot.slane %v1487, 1
        %v1588 = vrot.slane %v1488, 1
        %v1589 = vsel %vm457, %v1587, %v1588
        %v1590 = vrot.slane %v1489, 1
        %v1591 = vsel %vm457, %v1588, %v1590
        %v1592 = vrot.slane %v1490, 1
        %v1593 = vrot.slane %v1491, 1
        %v1594 = vsel %vm457, %v1592, %v1593
        %v1595 = vrot.slane %v1492, 1
        %v1596 = vsel %vm457, %v1593, %v1595
        %v1597 = vrot.slane %v1493, 1
        %v1598 = vrot.slane %v1494, 1
        %v1599 = vsel %vm457, %v1597, %v1598
        %v1600 = vrot.slane %v1495, 1
        %v1601 = vsel %vm457, %v1598, %v1600
        %v1602 = vrot.slane %v1496, 1
        %v1603 = vrot.slane %v1497, 1
        %v1604 = vsel %vm457, %v1602, %v1603
        %v1605 = vrot.slane %v1498, 1
        %v1606 = vsel %vm457, %v1603, %v1605
        %v1607 = vrot.slane %v1499, 1
        %v1608 = vrot.slane %v1500, 1
        %v1609 = vsel %vm457, %v1607, %v1608
        %v1610 = vrot.slane %v1501, 1
        %v1611 = vsel %vm457, %v1608, %v1610
        %v1612 = vrot.slane %v1502, 1
        %v1613 = vrot.slane %v1503, 1
        %v1614 = vsel %vm457, %v1612, %v1613
        %v1615 = vrot.slane %v1504, 1
        %v1616 = vsel %vm457, %v1613, %v1615
        %v1617 = vrot.slane %v1505, 1
        %v1618 = vrot.slane %v1506, 1
        %v1619 = vsel %vm457, %v1617, %v1618
        %v1620 = vrot.slane %v1507, 1
        %v1621 = vsel %vm457, %v1618, %v1620
        %v1622 = vrot.slane %v1508, 1
        %v1623 = vrot.slane %v1509, 1
        %v1624 = vsel %vm457, %v1622, %v1623
        %v1625 = vrot.slane %v1510, 1
        %v1626 = vsel %vm457, %v1623, %v1625
        %v1627 = vrot.slane %v1511, 1
        %v1628 = vrot.slane %v1512, 1
        %v1629 = vsel %vm457, %v1627, %v1628
        %v1630 = vrot.slane %v1513, 1
        %v1631 = vsel %vm457, %v1628, %v1630
        %v1632 = vrot.slane %v1514, 1
        %v1633 = vrot.slane %v1515, 1
        %v1634 = vsel %vm457, %v1632, %v1633
        %v1635 = vrot.slane %v1516, 1
        %v1636 = vsel %vm457, %v1633, %v1635
        %v1637 = vrot.slane %v1517, 1
        %v1638 = vrot.slane %v1518, 1
        %v1639 = vsel %vm457, %v1637, %v1638
        %v1640 = vrot.slane %v1519, 1
        %v1641 = vsel %vm457, %v1638, %v1640
        %v1642 = vrot.slane %v1520, 1
        %v1643 = vrot.slane %v1521, 1
        %v1644 = vsel %vm457, %v1642, %v1643
        %v1645 = vrot.slane %v1522, 1
        %v1646 = vsel %vm457, %v1643, %v1645
        %v1647 = vrot.slane %v1523, 1
        %v1648 = vrot.slane %v1524, 1
        %v1649 = vsel %vm457, %v1647, %v1648
        %v1650 = vrot.slane %v1525, 1
        %v1651 = vsel %vm457, %v1648, %v1650
        %v1652 = vrot.slane %v1526, 1
        %v1653 = vrot.slane %v1527, 1
        %v1654 = vsel %vm457, %v1652, %v1653
        %v1655 = vrot.slane %v1528, 1
        %v1656 = vsel %vm457, %v1653, %v1655
        %v1689 = vadd.f32 %v1444, %v1579
        %v1690 = vadd.f32 %v1445, %v1581
        %v1691 = vadd.f32 %v1446, %v1584
        %v1692 = vadd.f32 %v1447, %v1586
        %v1693 = vadd.f32 %v1448, %v1589
        %v1694 = vadd.f32 %v1449, %v1591
        %v1695 = vadd.f32 %v1450, %v1594
        %v1696 = vadd.f32 %v1451, %v1596
        %v1697 = vadd.f32 %v1452, %v1599
        %v1698 = vadd.f32 %v1453, %v1601
        %v1699 = vadd.f32 %v1454, %v1604
        %v1700 = vadd.f32 %v1455, %v1606
        %v1701 = vadd.f32 %v1456, %v1609
        %v1702 = vadd.f32 %v1457, %v1611
        %v1703 = vadd.f32 %v1458, %v1614
        %v1704 = vadd.f32 %v1459, %v1616
        %v1705 = vadd.f32 %v1460, %v1619
        %v1706 = vadd.f32 %v1461, %v1621
        %v1707 = vadd.f32 %v1462, %v1624
        %v1708 = vadd.f32 %v1463, %v1626
        %v1709 = vadd.f32 %v1464, %v1629
        %v1710 = vadd.f32 %v1465, %v1631
        %v1711 = vadd.f32 %v1466, %v1634
        %v1712 = vadd.f32 %v1467, %v1636
        %v1713 = vadd.f32 %v1468, %v1639
        %v1714 = vadd.f32 %v1469, %v1641
        %v1715 = vadd.f32 %v1470, %v1644
        %v1716 = vadd.f32 %v1471, %v1646
        %v1717 = vadd.f32 %v1472, %v1649
        %v1718 = vadd.f32 %v1473, %v1651
        %v1719 = vadd.f32 %v1474, %v1654
        %v1720 = vadd.f32 %v1475, %v1656
        %v1721 = vld [vmem:[%s221 + $0x8] sm:$0x1]
        %v1722 = vlaneseq
        %v1723 = vshrl.u32 %v1722, 7
        %v1724 = vsub.s32 0, %v1723
        %v1725 = vrot.slane %v1721, %v1724
        %v1726 = vmul.f32 %v231, %v1725
        %v1727 = vmul.f32 %v232, %v1725
        %v1728 = vmul.f32 %v233, %v1725
        %v1729 = vmul.f32 %v234, %v1725
        %v1730 = vmul.f32 %v235, %v1725
        %v1731 = vmul.f32 %v236, %v1725
        %v1732 = vmul.f32 %v237, %v1725
        %v1733 = vmul.f32 %v238, %v1725
        %v1734 = vmul.f32 %v239, %v1725
        %v1735 = vmul.f32 %v240, %v1725
        %v1736 = vmul.f32 %v241, %v1725
        %v1737 = vmul.f32 %v242, %v1725
        %v1738 = vmul.f32 %v243, %v1725
        %v1739 = vmul.f32 %v244, %v1725
        %v1740 = vmul.f32 %v245, %v1725
        %v1741 = vmul.f32 %v246, %v1725
        %v1742 = vmul.f32 %v247, %v1725
        %v1743 = vmul.f32 %v248, %v1725
        %v1744 = vmul.f32 %v249, %v1725
        %v1745 = vmul.f32 %v250, %v1725
        %v1746 = vmul.f32 %v251, %v1725
        %v1747 = vmul.f32 %v252, %v1725
        %v1748 = vmul.f32 %v253, %v1725
        %v1749 = vmul.f32 %v254, %v1725
        %v1750 = vmul.f32 %v255, %v1725
        %v1751 = vmul.f32 %v256, %v1725
        %v1752 = vmul.f32 %v257, %v1725
        %v1753 = vmul.f32 %v258, %v1725
        %v1754 = vmul.f32 %v259, %v1725
        %v1755 = vmul.f32 %v260, %v1725
        %v1756 = vmul.f32 %v261, %v1725
        %v1757 = vmul.f32 %v262, %v1725
        %v1758 = vmul.f32 %v263, %v1725
        %v1759 = vmul.f32 %v264, %v1725
        %v1760 = vmul.f32 %v265, %v1725
        %v1761 = vmul.f32 %v266, %v1725
        %v1762 = vmul.f32 %v267, %v1725
        %v1763 = vmul.f32 %v268, %v1725
        %v1764 = vmul.f32 %v269, %v1725
        %v1765 = vmul.f32 %v270, %v1725
        %v1766 = vmul.f32 %v271, %v1725
        %v1767 = vmul.f32 %v272, %v1725
        %v1768 = vmul.f32 %v273, %v1725
        %v1769 = vmul.f32 %v274, %v1725
        %v1770 = vmul.f32 %v275, %v1725
        %v1771 = vmul.f32 %v276, %v1725
        %v1772 = vmul.f32 %v277, %v1725
        %v1773 = vmul.f32 %v278, %v1725
        %v1822 = vrot.slane %v1726, 2
        %v1823 = vrot.slane %v1727, 2
        %v1824 = vsel %vm703, %v1822, %v1823
        %v1825 = vrot.slane %v1728, 2
        %v1826 = vsel %vm703, %v1823, %v1825
        %v1827 = vrot.slane %v1729, 2
        %v1828 = vrot.slane %v1730, 2
        %v1829 = vsel %vm703, %v1827, %v1828
        %v1830 = vrot.slane %v1731, 2
        %v1831 = vsel %vm703, %v1828, %v1830
        %v1832 = vrot.slane %v1732, 2
        %v1833 = vrot.slane %v1733, 2
        %v1834 = vsel %vm703, %v1832, %v1833
        %v1835 = vrot.slane %v1734, 2
        %v1836 = vsel %vm703, %v1833, %v1835
        %v1837 = vrot.slane %v1735, 2
        %v1838 = vrot.slane %v1736, 2
        %v1839 = vsel %vm703, %v1837, %v1838
        %v1840 = vrot.slane %v1737, 2
        %v1841 = vsel %vm703, %v1838, %v1840
        %v1842 = vrot.slane %v1738, 2
        %v1843 = vrot.slane %v1739, 2
        %v1844 = vsel %vm703, %v1842, %v1843
        %v1845 = vrot.slane %v1740, 2
        %v1846 = vsel %vm703, %v1843, %v1845
        %v1847 = vrot.slane %v1741, 2
        %v1848 = vrot.slane %v1742, 2
        %v1849 = vsel %vm703, %v1847, %v1848
        %v1850 = vrot.slane %v1743, 2
        %v1851 = vsel %vm703, %v1848, %v1850
        %v1852 = vrot.slane %v1744, 2
        %v1853 = vrot.slane %v1745, 2
        %v1854 = vsel %vm703, %v1852, %v1853
        %v1855 = vrot.slane %v1746, 2
        %v1856 = vsel %vm703, %v1853, %v1855
        %v1857 = vrot.slane %v1747, 2
        %v1858 = vrot.slane %v1748, 2
        %v1859 = vsel %vm703, %v1857, %v1858
        %v1860 = vrot.slane %v1749, 2
        %v1861 = vsel %vm703, %v1858, %v1860
        %v1862 = vrot.slane %v1750, 2
        %v1863 = vrot.slane %v1751, 2
        %v1864 = vsel %vm703, %v1862, %v1863
        %v1865 = vrot.slane %v1752, 2
        %v1866 = vsel %vm703, %v1863, %v1865
        %v1867 = vrot.slane %v1753, 2
        %v1868 = vrot.slane %v1754, 2
        %v1869 = vsel %vm703, %v1867, %v1868
        %v1870 = vrot.slane %v1755, 2
        %v1871 = vsel %vm703, %v1868, %v1870
        %v1872 = vrot.slane %v1756, 2
        %v1873 = vrot.slane %v1757, 2
        %v1874 = vsel %vm703, %v1872, %v1873
        %v1875 = vrot.slane %v1758, 2
        %v1876 = vsel %vm703, %v1873, %v1875
        %v1877 = vrot.slane %v1759, 2
        %v1878 = vrot.slane %v1760, 2
        %v1879 = vsel %vm703, %v1877, %v1878
        %v1880 = vrot.slane %v1761, 2
        %v1881 = vsel %vm703, %v1878, %v1880
        %v1882 = vrot.slane %v1762, 2
        %v1883 = vrot.slane %v1763, 2
        %v1884 = vsel %vm703, %v1882, %v1883
        %v1885 = vrot.slane %v1764, 2
        %v1886 = vsel %vm703, %v1883, %v1885
        %v1887 = vrot.slane %v1765, 2
        %v1888 = vrot.slane %v1766, 2
        %v1889 = vsel %vm703, %v1887, %v1888
        %v1890 = vrot.slane %v1767, 2
        %v1891 = vsel %vm703, %v1888, %v1890
        %v1892 = vrot.slane %v1768, 2
        %v1893 = vrot.slane %v1769, 2
        %v1894 = vsel %vm703, %v1892, %v1893
        %v1895 = vrot.slane %v1770, 2
        %v1896 = vsel %vm703, %v1893, %v1895
        %v1897 = vrot.slane %v1771, 2
        %v1898 = vrot.slane %v1772, 2
        %v1899 = vsel %vm703, %v1897, %v1898
        %v1900 = vrot.slane %v1773, 2
        %v1901 = vsel %vm703, %v1898, %v1900
        %v1934 = vadd.f32 %v1689, %v1824
        %v1935 = vadd.f32 %v1690, %v1826
        %v1936 = vadd.f32 %v1691, %v1829
        %v1937 = vadd.f32 %v1692, %v1831
        %v1938 = vadd.f32 %v1693, %v1834
        %v1939 = vadd.f32 %v1694, %v1836
        %v1940 = vadd.f32 %v1695, %v1839
        %v1941 = vadd.f32 %v1696, %v1841
        %v1942 = vadd.f32 %v1697, %v1844
        %v1943 = vadd.f32 %v1698, %v1846
        %v1944 = vadd.f32 %v1699, %v1849
        %v1945 = vadd.f32 %v1700, %v1851
        %v1946 = vadd.f32 %v1701, %v1854
        %v1947 = vadd.f32 %v1702, %v1856
        %v1948 = vadd.f32 %v1703, %v1859
        %v1949 = vadd.f32 %v1704, %v1861
        %v1950 = vadd.f32 %v1705, %v1864
        %v1951 = vadd.f32 %v1706, %v1866
        %v1952 = vadd.f32 %v1707, %v1869
        %v1953 = vadd.f32 %v1708, %v1871
        %v1954 = vadd.f32 %v1709, %v1874
        %v1955 = vadd.f32 %v1710, %v1876
        %v1956 = vadd.f32 %v1711, %v1879
        %v1957 = vadd.f32 %v1712, %v1881
        %v1958 = vadd.f32 %v1713, %v1884
        %v1959 = vadd.f32 %v1714, %v1886
        %v1960 = vadd.f32 %v1715, %v1889
        %v1961 = vadd.f32 %v1716, %v1891
        %v1962 = vadd.f32 %v1717, %v1894
        %v1963 = vadd.f32 %v1718, %v1896
        %v1964 = vadd.f32 %v1719, %v1899
        %v1965 = vadd.f32 %v1720, %v1901
        %1966 = vst [vmem:[%s209] sm:$0xff] %v1934
        %1967 = vst [vmem:[%s209 + $0x8] sm:$0xff] %v1935
        %1968 = vst [vmem:[%s209 + $0x10] sm:$0xff] %v1936
        %1969 = vst [vmem:[%s209 + $0x18] sm:$0xff] %v1937
        %1970 = vst [vmem:[%s209 + $0x20] sm:$0xff] %v1938
        %1971 = vst [vmem:[%s209 + $0x28] sm:$0xff] %v1939
        %1972 = vst [vmem:[%s209 + $0x30] sm:$0xff] %v1940
        %1973 = vst [vmem:[%s209 + $0x38] sm:$0xff] %v1941
        %1974 = vst [vmem:[%s209 + $0x40] sm:$0xff] %v1942
        %1975 = vst [vmem:[%s209 + $0x48] sm:$0xff] %v1943
        %1976 = vst [vmem:[%s209 + $0x50] sm:$0xff] %v1944
        %1977 = vst [vmem:[%s209 + $0x58] sm:$0xff] %v1945
        %1978 = vst [vmem:[%s209 + $0x60] sm:$0xff] %v1946
        %1979 = vst [vmem:[%s209 + $0x68] sm:$0xff] %v1947
        %1980 = vst [vmem:[%s209 + $0x70] sm:$0xff] %v1948
        %1981 = vst [vmem:[%s209 + $0x78] sm:$0xff] %v1949
        %1982 = vst [vmem:[%s209 + $0x80] sm:$0xff] %v1950
        %1983 = vst [vmem:[%s209 + $0x88] sm:$0xff] %v1951
        %1984 = vst [vmem:[%s209 + $0x90] sm:$0xff] %v1952
        %1985 = vst [vmem:[%s209 + $0x98] sm:$0xff] %v1953
        %1986 = vst [vmem:[%s209 + $0xa0] sm:$0xff] %v1954
        %1987 = vst [vmem:[%s209 + $0xa8] sm:$0xff] %v1955
        %1988 = vst [vmem:[%s209 + $0xb0] sm:$0xff] %v1956
        %1989 = vst [vmem:[%s209 + $0xb8] sm:$0xff] %v1957
        %1990 = vst [vmem:[%s209 + $0xc0] sm:$0xff] %v1958
        %1991 = vst [vmem:[%s209 + $0xc8] sm:$0xff] %v1959
        %1992 = vst [vmem:[%s209 + $0xd0] sm:$0xff] %v1960
        %1993 = vst [vmem:[%s209 + $0xd8] sm:$0xff] %v1961
        %1994 = vst [vmem:[%s209 + $0xe0] sm:$0xff] %v1962
        %1995 = vst [vmem:[%s209 + $0xe8] sm:$0xff] %v1963
        %1996 = vst [vmem:[%s209 + $0xf0] sm:$0xff] %v1964
        %1997 = vst [vmem:[%s209 + $0xf8] sm:$0xff] %v1965
        %s1998 = sand.u32 %s119, 1
        %s1999 = scalar_lea.sflag [#allocation3], %s1998
        %s2000 = sand.u32 %s119, 1
        %s2001 = smul.addr %s2000, 256
        %s2002 = scalar_lea.vmem [#allocation2], %s2001
        // Predicated region
        $region33: #{tpu_custom_call.1} parent=31 // pred_check
          %p2003 = pneg %p129
        $region34: #{tpu_custom_call.1} parent=31 // pred_check_branch
          %2005 = sbr.rel (%p2003) target = $region36
        $region35: #{tpu_custom_call.1} parent=31 // pred_region
          %s2007 = ssub.s32 4096, 4096
          %2008 = vsyncadd %s1999, %s2007
          %s2009 = smul.addr %s21, 32
          %s2010 = sadd.s32 %s22, %s2009
          %s2011 = smul.addr %s2010, 128
          %s2012 = scalar_lea.hbm %s3, %s2011
          %s2013 = sshll.u32 %s2002, 4
          %s2014 = int_to_ptr.vmem [resolvable:$true] %s2013
          %2019 = dma.vmem_to_hbm [thread:$0]  %s2014, 4096, %s2012, %s1999, 128, 128, 8
        $region36: #{tpu_custom_call.1} parent=31 // pred_fallthru
          _
      $region32: #{tpu_custom_call.1} parent=5 // pred_fallthru
        _
      %p2020 = scmp.le.s32.totalorder 2, %s12
      // Predicated region
      $region37: #{tpu_custom_call.1} parent=5 // pred_check
        %p2021 = pneg %p2020
      $region38: #{tpu_custom_call.1} parent=5 // pred_check_branch
        %2023 = sbr.rel (%p2021) target = $region40
      $region39: #{tpu_custom_call.1} parent=5 // pred_region
        %s2024 = ssub.s32 %s12, 2
        // Predicated region
        $region41: #{tpu_custom_call.1} parent=39 // pred_check
          %p2025 = pneg %p135
        $region42: #{tpu_custom_call.1} parent=39 // pred_check_branch
          %2027 = sbr.rel (%p2025) target = $region44
        $region43: #{tpu_custom_call.1} parent=39 // pred_region
          %s2028 = sand.u32 %s120, 1
          %s2029 = scalar_lea.sflag [#allocation3], %s2028
          %s2030 = sand.u32 %s120, 1
          %s2031 = smul.addr %s2030, 256
          %s2032 = scalar_lea.vmem [#allocation2], %s2031
          %2033 = dma.done %s2029, 4096
        $region44: #{tpu_custom_call.1} parent=39 // pred_fallthru
          _
      $region40: #{tpu_custom_call.1} parent=5 // pred_fallthru
        _
    $region6: #{tpu_custom_call.1} parent=1 // loop_footer
      %s16 = sadd.s32 1, %s12
    $region7: #{tpu_custom_call.1} parent=1 // loop_footer_branch
      %11 = sbr.rel target = $region3
    $region8: #{tpu_custom_call.1} parent=1 // loop_exit
      _
    %2034 = vsyncpa [#allocation3], 1
    %s2035 = scalar_lea.sflag [#allocation3], 1
    %2036 = vsyncpa %s2035, 1

</llo_original>
